<compile_context>
chip_gen: v7x
topology: tpu7x:2x2x1
jax: 0.10.0
libtpu: 0.0.40
codegen_flags: <defaults>
</compile_context>

<pallas_src>
import itertools

import numpy as np
import jax
import jax.numpy as jnp
from jax.experimental import pallas as pl
from jax.experimental.pallas import tpu as pltpu

# ------------------------------------------------------------------ config
IN_FEATURES = 4
LAYER_SIZE = 6
PREDICTOR_ORDERS = [1, 2, 3, 1, 2, 3]      # per-unit predictor polynomial order
GATE_ORDERS = [1, 1, 2, 2, 3, 3]           # per-unit gate polynomial order
OUT_FEATURES = 3
OUTPUT_TYPE = "linear"                     # head = nn.Linear(layer_size, out_features)

BATCH = 256                                # demo batch (multiple of TB)
TB = 128                                   # batch rows per grid step (keeps MXU M busy)

FA = IN_FEATURES + 1                       # bias-augmented feature count
ALL_ORDERS = PREDICTOR_ORDERS + GATE_ORDERS  # 2*L HONUs: predictors then gates
NU = 2 * LAYER_SIZE
R_MAX = max(ALL_ORDERS)


def _terms(order, fa):
    """All monomial index tuples of exact length `order` over the augmented input."""
    return list(itertools.combinations_with_replacement(range(fa), order))


N_TERMS = [len(_terms(o, FA)) for o in ALL_ORDERS]     # per-unit term counts
T_MAX = max(N_TERMS)                                   # 35 (only for padded weight storage)
OFFSETS = [int(v) for v in np.cumsum([0] + N_TERMS[:-1])]
P_RAW = int(np.sum(N_TERMS))                           # 220 real polynomial columns
P_PAD = ((P_RAW + 127) // 128) * 128                   # 256: one MXU N-pass on v6e/v7x
GLANE = 128                                            # gate lanes start at a lane-group boundary
Z_LANES = 2 * GLANE                                    # fused pred|gate reduce output width


# ------------------------------------------------------------------ parameter packing
def build_selector_slab():
    """Fused one-hot selector slab S_all of shape (FA, R_MAX*P_PAD).

    With big = x_aug @ S_all, the k-th 256-lane group of `big` holds the k-th
    factor of every tightly-packed polynomial column; their elementwise product
    reproduces prod_k x_aug[i_k(t)] for HONU u, term t at lane OFFSETS[u] + t.
    Padding factors (k >= order) select the bias column (factor 1.0); padded
    lanes (>= P_RAW) are all-zero in every factor and carry zero reduce weight.
    """
    S = np.zeros((R_MAX, FA, P_PAD), np.float32)
    for u, order in enumerate(ALL_ORDERS):
        base = OFFSETS[u]
        for t, tup in enumerate(_terms(order, FA)):
            for k in range(R_MAX):
                if k < order:
                    S[k, tup[k], base + t] = 1.0
                else:
                    S[k, 0, base + t] = 1.0            # bias column -> factor 1.0
    return np.ascontiguousarray(np.concatenate(list(S), axis=1))   # (FA, R_MAX*P_PAD)


def build_reduce_matrix(w_honu_np):
    """Fused reduce RHS (P_PAD, 256): predictor weights of unit u in lane u,
    gate weights of unit u in lane 128+u, so preds/gates split at a 128-lane
    group boundary (slice-free vreg split, no XLU)."""
    wr = np.zeros((P_PAD, Z_LANES), np.float32)
    for u, n in enumerate(N_TERMS):
        base = OFFSETS[u]
        if u < LAYER_SIZE:
            wr[base:base + n, u] = w_honu_np[u, :n]
        else:
            wr[base:base + n, GLANE + (u - LAYER_SIZE)] = w_honu_np[u, :n]
    return wr


# ------------------------------------------------------------------ kernel
def ghonn_kernel(x_ref, s_ref, wr_ref, wh_ref, bh_ref, o_ref):
    # x_ref : (TB, FA)            bias-augmented input tile (pipelined)
    # s_ref : (FA, R_MAX*P_PAD)   fused one-hot selector slab (resident)
    # wr_ref: (P_PAD, 256)        fused predictor|gate reduce weights (resident)
    # wh_ref: (128, OUT_FEATURES) zero-padded head weight, already transposed (resident)
    # bh_ref: (1, OUT_FEATURES)   head bias (resident)
    xa = x_ref[...]

    # One wide MXU matmul produces all R_MAX factor slabs at once; split at
    # 128-lane group boundaries (free) and multiply on the VPU.
    big = jnp.dot(xa, s_ref[...], preferred_element_type=jnp.float32)  # (TB, R_MAX*P_PAD)
    colx = big[:, 0:P_PAD]
    for k in range(1, R_MAX):
        colx = colx * big[:, k * P_PAD:(k + 1) * P_PAD]                # (TB, P_PAD)

    # Single fused reduce matmul: predictors land in lanes [0, L), gates in
    # lanes [128, 128+L).  Padded lanes have zero weights -> preds are 0 there,
    # so preds * sigmoid(gates) is exactly 0 on padding.
    z = jnp.dot(colx, wr_ref[...], preferred_element_type=jnp.float32)  # (TB, 256)
    outs = z[:, :GLANE] * jax.nn.sigmoid(z[:, GLANE:])                  # (TB, 128)

    # Linear head; wh rows >= LAYER_SIZE are zero so padded lanes contribute 0.
    # NOTE(review): if tighter tolerances are ever needed, add
    # precision=jax.lax.Precision.HIGHEST to this dot and the reduce dot.
    y = jnp.dot(outs, wh_ref[...], preferred_element_type=jnp.float32)  # (TB, OUT)
    o_ref[...] = y + bh_ref[...]


@jax.jit
def ghonn_forward(x, s_all, w_reduce, w_head_pad, b_head):
    b = x.shape[0]
    x_aug = jnp.concatenate([jnp.ones((b, 1), x.dtype), x], axis=-1)    # (B, FA)
    b_pad = ((b + TB - 1) // TB) * TB
    if b_pad != b:                                                       # static check
        x_aug = jnp.pad(x_aug, ((0, b_pad - b), (0, 0)))
    y = pl.pallas_call(
        ghonn_kernel,
        out_shape=jax.ShapeDtypeStruct((b_pad, OUT_FEATURES), jnp.float32),
        grid=(b_pad // TB,),
        in_specs=[
            pl.BlockSpec((TB, FA), lambda i: (i, 0)),                    # x tile: pipelined
            pl.BlockSpec((FA, R_MAX * P_PAD), lambda i: (0, 0)),         # params: resident
            pl.BlockSpec((P_PAD, Z_LANES), lambda i: (0, 0)),
            pl.BlockSpec((GLANE, OUT_FEATURES), lambda i: (0, 0)),
            pl.BlockSpec((1, OUT_FEATURES), lambda i: (0, 0)),
        ],
        out_specs=pl.BlockSpec((TB, OUT_FEATURES), lambda i: (i, 0)),
        compiler_params=pltpu.CompilerParams(
            dimension_semantics=("parallel",)),      # batch tiles shard across TCs (v7x)
    )(x_aug, s_all, w_reduce, w_head_pad, b_head)
    return y[:b]


# ------------------------------------------------------------------ reference
def ghonn_reference(x, w_honu, w_head_t, b_head):
    x_aug = jnp.concatenate([jnp.ones((x.shape[0], 1), x.dtype), x], axis=-1)
    zs = []
    for u, order in enumerate(ALL_ORDERS):
        terms = _terms(order, FA)
        cols = jnp.stack(
            [jnp.prod(x_aug[:, list(tup)], axis=-1) for tup in terms], axis=-1)
        zs.append(cols @ w_honu[u, : len(terms)])
    z = jnp.stack(zs, axis=-1)                               # (B, 2L)
    outs = z[:, :LAYER_SIZE] * jax.nn.sigmoid(z[:, LAYER_SIZE:])
    return outs @ w_head_t + b_head


# ------------------------------------------------------------------ main
if __name__ == "__main__":
    key = jax.random.PRNGKey(0)
    k_x, k_w, k_wh, k_bh = jax.random.split(key, 4)

    # deterministic synthetic parameters (shapes follow the module __init__)
    w_honu = 0.1 * jax.random.normal(k_w, (NU, T_MAX), jnp.float32)
    term_mask = np.zeros((NU, T_MAX), np.float32)
    for u, n in enumerate(N_TERMS):
        term_mask[u, :n] = 1.0
    w_honu = w_honu * jnp.asarray(term_mask)                 # zero the padded terms

    s_all_np = build_selector_slab()
    w_reduce_np = build_reduce_matrix(np.asarray(w_honu))

    w_head = 0.1 * jax.random.normal(k_wh, (OUT_FEATURES, LAYER_SIZE), jnp.float32)
    w_head_t = w_head.T                                      # (LAYER_SIZE, OUT_FEATURES)
    w_head_pad = jnp.zeros((GLANE, OUT_FEATURES), jnp.float32).at[:LAYER_SIZE].set(w_head_t)
    b_head = 0.1 * jax.random.normal(k_bh, (1, OUT_FEATURES), jnp.float32)

    x = jax.random.normal(k_x, (BATCH, IN_FEATURES), jnp.float32)

    y = ghonn_forward(x, jnp.asarray(s_all_np), jnp.asarray(w_reduce_np),
                      w_head_pad, b_head)
    y = jax.block_until_ready(y)

    y_ref = ghonn_reference(x, w_honu, w_head_t, b_head)
    assert y.shape == (BATCH, OUT_FEATURES)
    np.testing.assert_allclose(np.asarray(y), np.asarray(y_ref),
                               rtol=1e-4, atol=1e-5)

    print("KERNEL_OK")
</pallas_src>

<mosaic_0001>
module attributes {stable_mosaic.version = 11 : i64} {
  func.func @ghonn_kernel(%arg0: i32, %arg1: memref<128x5xf32, #tpu.memory_space<vmem>>, %arg2: memref<5x768xf32, #tpu.memory_space<vmem>>, %arg3: memref<256x256xf32, #tpu.memory_space<vmem>>, %arg4: memref<128x3xf32, #tpu.memory_space<vmem>>, %arg5: memref<1x3xf32, #tpu.memory_space<vmem>>, %arg6: memref<128x3xf32, #tpu.memory_space<vmem>>) attributes {dimension_semantics = [#tpu.dimension_semantics<parallel>], iteration_bounds = array<i64: 2>, scalar_prefetch = 0 : i64, scratch_operands = 0 : i64, tpu.core_type = #tpu.core_type<tc>, window_params = [{transform_indices = @transform_0, window_bounds = array<i64: 128, 5>}, {pipeline_mode = #tpu.pipeline_mode<synchronous>, transform_indices = @transform_1, window_bounds = array<i64: 5, 768>}, {pipeline_mode = #tpu.pipeline_mode<synchronous>, transform_indices = @transform_2, window_bounds = array<i64: 256, 256>}, {pipeline_mode = #tpu.pipeline_mode<synchronous>, transform_indices = @transform_3, window_bounds = array<i64: 128, 3>}, {pipeline_mode = #tpu.pipeline_mode<synchronous>, transform_indices = @transform_4, window_bounds = array<i64: 1, 3>}, {transform_indices = @transform_5, window_bounds = array<i64: 128, 3>}]} {
    %c0 = arith.constant 0 : index
    %c0_0 = arith.constant 0 : index
    %0 = vector.load %arg1[%c0, %c0_0] : memref<128x5xf32, #tpu.memory_space<vmem>>, vector<128x5xf32>
    %c0_1 = arith.constant 0 : index
    %c0_2 = arith.constant 0 : index
    %1 = vector.load %arg2[%c0_1, %c0_2] : memref<5x768xf32, #tpu.memory_space<vmem>>, vector<5x768xf32>
    %cst = arith.constant dense<0.000000e+00> : vector<128x768xf32>
    %2 = tpu.matmul %0, %1, %cst {dimension_numbers = #tpu.dot_dimension_numbers<[1], [0], [0], [1], [0, 0, 1, 1], [], []>} : vector<128x5xf32>, vector<5x768xf32>, vector<128x768xf32> -> vector<128x768xf32>
    %3 = vector.extract_strided_slice %2 {offsets = [0, 0], sizes = [128, 256], strides = [1, 1]} : vector<128x768xf32> to vector<128x256xf32>
    %4 = vector.extract_strided_slice %2 {offsets = [0, 256], sizes = [128, 256], strides = [1, 1]} : vector<128x768xf32> to vector<128x256xf32>
    %5 = arith.mulf %3, %4 : vector<128x256xf32>
    %6 = vector.extract_strided_slice %2 {offsets = [0, 512], sizes = [128, 256], strides = [1, 1]} : vector<128x768xf32> to vector<128x256xf32>
    %7 = arith.mulf %5, %6 : vector<128x256xf32>
    %c0_3 = arith.constant 0 : index
    %c0_4 = arith.constant 0 : index
    %8 = vector.load %arg3[%c0_3, %c0_4] : memref<256x256xf32, #tpu.memory_space<vmem>>, vector<256x256xf32>
    %cst_5 = arith.constant dense<0.000000e+00> : vector<128x256xf32>
    %9 = tpu.matmul %7, %8, %cst_5 {dimension_numbers = #tpu.dot_dimension_numbers<[1], [0], [0], [1], [0, 0, 1, 1], [], []>} : vector<128x256xf32>, vector<256x256xf32>, vector<128x256xf32> -> vector<128x256xf32>
    %10 = vector.extract_strided_slice %9 {offsets = [0, 0], sizes = [128, 128], strides = [1, 1]} : vector<128x256xf32> to vector<128x128xf32>
    %11 = vector.extract_strided_slice %9 {offsets = [0, 128], sizes = [128, 128], strides = [1, 1]} : vector<128x256xf32> to vector<128x128xf32>
    %12 = arith.negf %11 : vector<128x128xf32>
    %13 = math.exp %12 : vector<128x128xf32>
    %cst_6 = arith.constant 1.000000e+00 : f32
    %14 = vector.broadcast %cst_6 : f32 to vector<128x128xf32>
    %15 = arith.addf %14, %13 : vector<128x128xf32>
    %16 = arith.divf %14, %15 : vector<128x128xf32>
    %17 = arith.mulf %10, %16 : vector<128x128xf32>
    %c0_7 = arith.constant 0 : index
    %c0_8 = arith.constant 0 : index
    %18 = vector.load %arg4[%c0_7, %c0_8] : memref<128x3xf32, #tpu.memory_space<vmem>>, vector<128x3xf32>
    %cst_9 = arith.constant dense<0.000000e+00> : vector<128x3xf32>
    %19 = tpu.matmul %17, %18, %cst_9 {dimension_numbers = #tpu.dot_dimension_numbers<[1], [0], [0], [1], [0, 0, 1, 1], [], []>} : vector<128x128xf32>, vector<128x3xf32>, vector<128x3xf32> -> vector<128x3xf32>
    %c0_10 = arith.constant 0 : index
    %c0_11 = arith.constant 0 : index
    %20 = vector.load %arg5[%c0_10, %c0_11] : memref<1x3xf32, #tpu.memory_space<vmem>>, vector<1x3xf32>
    %21 = vector.broadcast %20 : vector<1x3xf32> to vector<128x3xf32>
    %22 = arith.addf %19, %21 : vector<128x3xf32>
    %c0_12 = arith.constant 0 : index
    %c0_13 = arith.constant 0 : index
    %23 = vector.load %arg6[%c0_12, %c0_13] : memref<128x3xf32, #tpu.memory_space<vmem>>, vector<128x3xf32>
    tpu.vector_store %arg6[%c0_12, %c0_13], %22 {strides = array<i32>} : memref<128x3xf32, #tpu.memory_space<vmem>>, vector<128x3xf32>,
    return
  }
  func.func @transform_0(%arg0: i32) -> (i32, i32) {
    %c0_i32 = arith.constant 0 : i32
    %c0_i32_0 = arith.constant 0 : i32
    return %arg0, %c0_i32 : i32, i32
  }
  func.func @transform_1(%arg0: i32) -> (i32, i32) {
    %c0_i32 = arith.constant 0 : i32
    %c0_i32_0 = arith.constant 0 : i32
    %c0_i32_1 = arith.constant 0 : i32
    return %c0_i32, %c0_i32_0 : i32, i32
  }
  func.func @transform_2(%arg0: i32) -> (i32, i32) {
    %c0_i32 = arith.constant 0 : i32
    %c0_i32_0 = arith.constant 0 : i32
    %c0_i32_1 = arith.constant 0 : i32
    return %c0_i32, %c0_i32_0 : i32, i32
  }
  func.func @transform_3(%arg0: i32) -> (i32, i32) {
    %c0_i32 = arith.constant 0 : i32
    %c0_i32_0 = arith.constant 0 : i32
    %c0_i32_1 = arith.constant 0 : i32
    return %c0_i32, %c0_i32_0 : i32, i32
  }
  func.func @transform_4(%arg0: i32) -> (i32, i32) {
    %c0_i32 = arith.constant 0 : i32
    %c0_i32_0 = arith.constant 0 : i32
    %c0_i32_1 = arith.constant 0 : i32
    return %c0_i32, %c0_i32_0 : i32, i32
  }
  func.func @transform_5(%arg0: i32) -> (i32, i32) {
    %c0_i32 = arith.constant 0 : i32
    %c0_i32_0 = arith.constant 0 : i32
    return %arg0, %c0_i32 : i32, i32
  }
}

</mosaic_0001>

<llo_original>
// kernel: ghonn_forward.1
$region0: #{ghonn_forward.1}
  #allocation0 [shape = 'u32[]', space=smem, size = 0x4, offset = 0x4, fixed_abs, tag = 'smem constant byte address 0x4 - core index']
  #allocation1 [shape = 'u32[144,128]{1,0:T(1,128)}', space=vmem, size = 0x12000, scoped, tag = 'internal scratch']
  %s0 = inlined_call_operand.vmem [shape: f32[256,5], index: 0, kind: input, shape index: {}]
  %s1 = inlined_call_operand.vmem [shape: f32[5,768], index: 1, kind: input, shape index: {}]
  %s2 = inlined_call_operand.vmem [shape: f32[256,256], index: 2, kind: input, shape index: {}]
  %s3 = inlined_call_operand.vmem [shape: f32[128,3], index: 3, kind: input, shape index: {}]
  %s4 = inlined_call_operand.vmem [shape: f32[1,3], index: 4, kind: input, shape index: {}]
  %s5 = inlined_call_operand.vmem [shape: f32[256,3], index: 5, kind: output, shape index: {}]
  %s6 = sld [smem:[#allocation0]]
  $region53: #{ghonn_forward.1} parent=0
    _
  %s8 = ssub.s32 1, %s6
  %s9 = scalar_select 0, %s8, %s6
  loop: start=0, step=1, limit=4
  $region2: #{ghonn_forward.1} parent=0 // loop_pre_header
    _
  $region3: #{ghonn_forward.1} parent=0 // loop_header
    %s11 = sphi 0, %s15
    %p12 = scmp.ge.s32.totalorder %s11, 4
    %s21 = sphi 0, %s23
    %s24 = sphi 0, %s21
    %s25 = sphi 0, %s24
    %s41 = sphi 0, %s25
    %s45 = sphi 0, %s45
    %s47 = sphi 0, %s45
    %s48 = sphi 0, %s47
    %s62 = sphi 0, %s48
    %s66 = sphi 0, %s66
    %s68 = sphi 0, %s66
    %s69 = sphi 0, %s68
    %s83 = sphi 0, %s69
    %s87 = sphi 0, %s87
    %s89 = sphi 0, %s87
    %s90 = sphi 0, %s89
    %s104 = sphi 0, %s90
    %s108 = sphi 0, %s108
    %s110 = sphi 0, %s108
    %s111 = sphi 0, %s110
    %s125 = sphi 0, %s111
    %s131 = sphi 0, %s133
    %s134 = sphi 0, %s131
    %s135 = sphi 0, %s134
    %s151 = sphi 0, %s135
  $region4: #{ghonn_forward.1} parent=0 // loop_header_branch
    %14 = sbr.rel (%p12) target = $region8
  $region5: #{ghonn_forward.1} parent=0 // loop_body
    %s16 = ssub.s32 %s11, 1
    %s17 = ssub.s32 %s11, 2
    %s18 = sadd.s32 %s11, 1
    %s19 = ssub.s32 %s11, %s18
    %p20 = scmp.eq.s32.totalorder %s19, 0
    %s22 = sadd.s32 %s21, 1
    %s23 = scalar_select %p20, %s21, %s22
    %p26 = pneg %p20
    %p27 = scmp.eq.s32.totalorder %s11, 1
    %p28 = por %p26, %p27
    %p29 = scmp.ne.s32.totalorder %s21, %s24
    %p30 = scmp.eq.s32.totalorder %s11, 0
    %p31 = por %p29, %p30
    %p32 = scmp.ne.s32.totalorder %s21, %s24
    %p33 = scmp.eq.s32.totalorder %s16, 1
    %p34 = por %p32, %p33
    %p35 = scmp.ne.s32.totalorder %s24, %s25
    %p36 = scmp.eq.s32.totalorder %s16, 0
    %p37 = por %p35, %p36
    %p38 = scmp.ne.s32.totalorder %s24, %s25
    %p39 = scmp.eq.s32.totalorder %s17, 1
    %p40 = por %p38, %p39
    %p42 = scmp.ne.s32.totalorder %s25, %s41
    %p43 = scmp.eq.s32.totalorder %s17, 0
    %p44 = por %p42, %p43
    %s46 = sadd.s32 %s45, 1
    %p49 = scmp.eq.s32.totalorder %s11, 1
    %p50 = scmp.ne.s32.totalorder %s45, %s47
    %p51 = scmp.eq.s32.totalorder %s11, 0
    %p52 = por %p50, %p51
    %p53 = scmp.ne.s32.totalorder %s45, %s47
    %p54 = scmp.eq.s32.totalorder %s16, 1
    %p55 = por %p53, %p54
    %p56 = scmp.ne.s32.totalorder %s47, %s48
    %p57 = scmp.eq.s32.totalorder %s16, 0
    %p58 = por %p56, %p57
    %p59 = scmp.ne.s32.totalorder %s47, %s48
    %p60 = scmp.eq.s32.totalorder %s17, 1
    %p61 = por %p59, %p60
    %p63 = scmp.ne.s32.totalorder %s48, %s62
    %p64 = scmp.eq.s32.totalorder %s17, 0
    %p65 = por %p63, %p64
    %s67 = sadd.s32 %s66, 1
    %p70 = scmp.eq.s32.totalorder %s11, 1
    %p71 = scmp.ne.s32.totalorder %s66, %s68
    %p72 = scmp.eq.s32.totalorder %s11, 0
    %p73 = por %p71, %p72
    %p74 = scmp.ne.s32.totalorder %s66, %s68
    %p75 = scmp.eq.s32.totalorder %s16, 1
    %p76 = por %p74, %p75
    %p77 = scmp.ne.s32.totalorder %s68, %s69
    %p78 = scmp.eq.s32.totalorder %s16, 0
    %p79 = por %p77, %p78
    %p80 = scmp.ne.s32.totalorder %s68, %s69
    %p81 = scmp.eq.s32.totalorder %s17, 1
    %p82 = por %p80, %p81
    %p84 = scmp.ne.s32.totalorder %s69, %s83
    %p85 = scmp.eq.s32.totalorder %s17, 0
    %p86 = por %p84, %p85
    %s88 = sadd.s32 %s87, 1
    %p91 = scmp.eq.s32.totalorder %s11, 1
    %p92 = scmp.ne.s32.totalorder %s87, %s89
    %p93 = scmp.eq.s32.totalorder %s11, 0
    %p94 = por %p92, %p93
    %p95 = scmp.ne.s32.totalorder %s87, %s89
    %p96 = scmp.eq.s32.totalorder %s16, 1
    %p97 = por %p95, %p96
    %p98 = scmp.ne.s32.totalorder %s89, %s90
    %p99 = scmp.eq.s32.totalorder %s16, 0
    %p100 = por %p98, %p99
    %p101 = scmp.ne.s32.totalorder %s89, %s90
    %p102 = scmp.eq.s32.totalorder %s17, 1
    %p103 = por %p101, %p102
    %p105 = scmp.ne.s32.totalorder %s90, %s104
    %p106 = scmp.eq.s32.totalorder %s17, 0
    %p107 = por %p105, %p106
    %s109 = sadd.s32 %s108, 1
    %p112 = scmp.eq.s32.totalorder %s11, 1
    %p113 = scmp.ne.s32.totalorder %s108, %s110
    %p114 = scmp.eq.s32.totalorder %s11, 0
    %p115 = por %p113, %p114
    %p116 = scmp.ne.s32.totalorder %s108, %s110
    %p117 = scmp.eq.s32.totalorder %s16, 1
    %p118 = por %p116, %p117
    %p119 = scmp.ne.s32.totalorder %s110, %s111
    %p120 = scmp.eq.s32.totalorder %s16, 0
    %p121 = por %p119, %p120
    %p122 = scmp.ne.s32.totalorder %s110, %s111
    %p123 = scmp.eq.s32.totalorder %s17, 1
    %p124 = por %p122, %p123
    %p126 = scmp.ne.s32.totalorder %s111, %s125
    %p127 = scmp.eq.s32.totalorder %s17, 0
    %p128 = por %p126, %p127
    %s129 = ssub.s32 %s11, %s18
    %p130 = scmp.eq.s32.totalorder %s129, 0
    %s132 = sadd.s32 %s131, 1
    %s133 = scalar_select %p130, %s131, %s132
    %p136 = pneg %p130
    %p137 = scmp.eq.s32.totalorder %s11, 1
    %p138 = por %p136, %p137
    %p139 = scmp.ne.s32.totalorder %s131, %s134
    %p140 = scmp.eq.s32.totalorder %s11, 0
    %p141 = por %p139, %p140
    %p142 = scmp.ne.s32.totalorder %s131, %s134
    %p143 = scmp.eq.s32.totalorder %s16, 1
    %p144 = por %p142, %p143
    %p145 = scmp.ne.s32.totalorder %s134, %s135
    %p146 = scmp.eq.s32.totalorder %s16, 0
    %p147 = por %p145, %p146
    %p148 = scmp.ne.s32.totalorder %s134, %s135
    %p149 = scmp.eq.s32.totalorder %s17, 1
    %p150 = por %p148, %p149
    %p152 = scmp.ne.s32.totalorder %s135, %s151
    %p153 = scmp.eq.s32.totalorder %s17, 0
    %p154 = por %p152, %p153
    %p155 = scmp.le.s32.totalorder 1, %s11
    %p156 = scmp.lt.s32.totalorder %s11, 3
    %p157 = pnand %p155, %p156
    %p158 = pneg %p157
    // Predicated region
    $region9: #{ghonn_forward.1} parent=5 // pred_check
      _
    $region10: #{ghonn_forward.1} parent=5 // pred_check_branch
      %160 = sbr.rel (%p157) target = $region12
    $region11: #{ghonn_forward.1} parent=5 // pred_region
      %s161 = ssub.s32 %s11, 1
      // Predicated region
      $region13: #{ghonn_forward.1} parent=11 // pred_check
        %p162 = pneg %p58
      $region14: #{ghonn_forward.1} parent=11 // pred_check_branch
        %164 = sbr.rel (%p162) target = $region16
      $region15: #{ghonn_forward.1} parent=11 // pred_region
        _
      $region16: #{ghonn_forward.1} parent=11 // pred_fallthru
        _
      // Predicated region
      $region17: #{ghonn_forward.1} parent=11 // pred_check
        %p165 = pneg %p79
      $region18: #{ghonn_forward.1} parent=11 // pred_check_branch
        %167 = sbr.rel (%p165) target = $region20
      $region19: #{ghonn_forward.1} parent=11 // pred_region
        _
      $region20: #{ghonn_forward.1} parent=11 // pred_fallthru
        _
      // Predicated region
      $region21: #{ghonn_forward.1} parent=11 // pred_check
        %p168 = pneg %p100
      $region22: #{ghonn_forward.1} parent=11 // pred_check_branch
        %170 = sbr.rel (%p168) target = $region24
      $region23: #{ghonn_forward.1} parent=11 // pred_region
        _
      $region24: #{ghonn_forward.1} parent=11 // pred_fallthru
        _
      // Predicated region
      $region25: #{ghonn_forward.1} parent=11 // pred_check
        %p171 = pneg %p121
      $region26: #{ghonn_forward.1} parent=11 // pred_check_branch
        %173 = sbr.rel (%p171) target = $region28
      $region27: #{ghonn_forward.1} parent=11 // pred_region
        _
      $region28: #{ghonn_forward.1} parent=11 // pred_fallthru
        _
    $region12: #{ghonn_forward.1} parent=5 // pred_fallthru
      _
    %p174 = scmp.lt.s32.totalorder %s11, 2
    // Predicated region
    $region29: #{ghonn_forward.1} parent=5 // pred_check
      %p175 = pneg %p174
    $region30: #{ghonn_forward.1} parent=5 // pred_check_branch
      %177 = sbr.rel (%p175) target = $region32
    $region31: #{ghonn_forward.1} parent=5 // pred_region
      // Predicated region
      $region33: #{ghonn_forward.1} parent=31 // pred_check
        %p178 = pneg %p31
      $region34: #{ghonn_forward.1} parent=31 // pred_check_branch
        %180 = sbr.rel (%p178) target = $region36
      $region35: #{ghonn_forward.1} parent=31 // pred_region
        %s181 = smul.u32 16, %s11
        %p182 = scmp.lt.s32.totalorder %s181, 31
        %s183 = scalar_select %p182, %s181, 31
        %s184 = smul.addr %s183, 8
        %s185 = scalar_lea.vmem %s0, %s184
        %s186 = smul.u32 16, %s11
      $region36: #{ghonn_forward.1} parent=31 // pred_fallthru
        _
    $region32: #{ghonn_forward.1} parent=5 // pred_fallthru
      _
    %p187 = scmp.le.s32.totalorder 1, %s11
    %p188 = scmp.lt.s32.totalorder %s11, 3
    %p189 = pnand %p187, %p188
    %p190 = pneg %p189
    // Predicated region
    $region37: #{ghonn_forward.1} parent=5 // pred_check
      _
    $region38: #{ghonn_forward.1} parent=5 // pred_check_branch
      %192 = sbr.rel (%p189) target = $region40
    $region39: #{ghonn_forward.1} parent=5 // pred_region
      %s193 = ssub.s32 %s11, 1
      %s194 = smul.u32 16, %s16
      %p195 = scmp.lt.s32.totalorder %s194, 31
      %s196 = scalar_select %p195, %s194, 31
      %s197 = smul.addr %s196, 8
      %s198 = scalar_lea.vmem %s0, %s197
      %p199 = pneg %p37
      %p200 = pneg %p34
      %p201 = pneg %p58
      %p202 = pneg %p55
      %p203 = pneg %p79
      %p204 = pneg %p76
      %p205 = pneg %p100
      %p206 = pneg %p97
      %p207 = pneg %p121
      %p208 = pneg %p118
      %p209 = pneg %p147
      %p210 = pneg %p144
      %s211 = smul.u32 16, %s16
      %p212 = scmp.lt.s32.totalorder %s211, 31
      %s213 = scalar_select %p212, %s211, 31
      %s214 = smul.addr %s213, 8
      %s215 = scalar_lea.vmem %s5, %s214
      %s216 = smul.u32 16, %s16
      %p217 = scmp.lt.s32.totalorder %s216, 31
      %s218 = scalar_select %p217, %s216, 31
      %s219 = smul.addr %s218, 8
      %s220 = scalar_lea.vmem %s0, %s219
      %s221 = smul.u32 16, %s16
      %s222 = smul.u32 16, %s16
      %p223 = scmp.lt.s32.totalorder %s222, 31
      %s224 = scalar_select %p223, %s222, 31
      %s225 = smul.addr %s224, 8
      %s226 = scalar_lea.vmem %s5, %s225
      %s227 = smul.u32 16, %s16
      %v228 = vld [vmem:[%s220] sm:$0xff]
      %v229 = vld [vmem:[%s220 + $0x8] sm:$0xff]
      %v230 = vld [vmem:[%s220 + $0x10] sm:$0xff]
      %v231 = vld [vmem:[%s220 + $0x18] sm:$0xff]
      %v232 = vld [vmem:[%s220 + $0x20] sm:$0xff]
      %v233 = vld [vmem:[%s220 + $0x28] sm:$0xff]
      %v234 = vld [vmem:[%s220 + $0x30] sm:$0xff]
      %v235 = vld [vmem:[%s220 + $0x38] sm:$0xff]
      %v236 = vld [vmem:[%s220 + $0x40] sm:$0xff]
      %v237 = vld [vmem:[%s220 + $0x48] sm:$0xff]
      %v238 = vld [vmem:[%s220 + $0x50] sm:$0xff]
      %v239 = vld [vmem:[%s220 + $0x58] sm:$0xff]
      %v240 = vld [vmem:[%s220 + $0x60] sm:$0xff]
      %v241 = vld [vmem:[%s220 + $0x68] sm:$0xff]
      %v242 = vld [vmem:[%s220 + $0x70] sm:$0xff]
      %v243 = vld [vmem:[%s220 + $0x78] sm:$0xff]
      %v244 = vld [vmem:[%s1] sm:$0x1f]
      %v245 = vld [vmem:[%s1 + $0x8] sm:$0x1f]
      %v246 = vld [vmem:[%s1 + $0x10] sm:$0x1f]
      %v247 = vld [vmem:[%s1 + $0x18] sm:$0x1f]
      %v248 = vld [vmem:[%s1 + $0x20] sm:$0x1f]
      %v249 = vld [vmem:[%s1 + $0x28] sm:$0x1f]
      %vm250 = vcmask 39936
      %v252 = vsel %vm250, %v228, 0
      %v255 = vsel %vm250, %v229, 0
      %v258 = vsel %vm250, %v230, 0
      %v261 = vsel %vm250, %v231, 0
      %v264 = vsel %vm250, %v232, 0
      %v267 = vsel %vm250, %v233, 0
      %v270 = vsel %vm250, %v234, 0
      %v273 = vsel %vm250, %v235, 0
      %v276 = vsel %vm250, %v236, 0
      %v279 = vsel %vm250, %v237, 0
      %v282 = vsel %vm250, %v238, 0
      %v285 = vsel %vm250, %v239, 0
      %v288 = vsel %vm250, %v240, 0
      %v291 = vsel %vm250, %v241, 0
      %v294 = vsel %vm250, %v242, 0
      %v297 = vsel %vm250, %v243, 0
      %vm299 = vcmask 1044480
      %v301 = vsel %vm299, %v244, 0
      %v304 = vsel %vm299, %v245, 0
      %v307 = vsel %vm299, %v246, 0
      %v310 = vsel %vm299, %v247, 0
      %v313 = vsel %vm299, %v248, 0
      %v316 = vsel %vm299, %v249, 0
      %318 = vmatprep.subr.mxu0 %v304
      %319 = vmatpush1.msra.mxu0 %v301
      %320 = vmatprep.subr.mxu0 0.0
      %321 = vmatpush1.msra.mxu0 0.0
      %322 = vmatprep.subr.mxu0 0.0
      %323 = vmatpush1.msra.mxu0 0.0
      %324 = vmatprep.subr.mxu0 0.0
      %325 = vmatpush1.msra.mxu0 0.0
      %326 = vmatprep.subr.mxu0 0.0
      %327 = vmatpush1.msra.mxu0 0.0
      %328 = vmatprep.subr.mxu0 0.0
      %329 = vmatpush1.msra.mxu0 0.0
      %330 = vmatprep.subr.mxu0 0.0
      %331 = vmatpush1.msra.mxu0 0.0
      %332 = vmatprep.subr.mxu0 0.0
      %333 = vmatpush1.msra.mxu0 0.0
      %334 = vmatprep.subr.mxu0 0.0
      %335 = vmatpush1.msra.mxu0 0.0
      %336 = vmatprep.subr.mxu0 0.0
      %337 = vmatpush1.msra.mxu0 0.0
      %338 = vmatprep.subr.mxu0 0.0
      %339 = vmatpush1.msra.mxu0 0.0
      %340 = vmatprep.subr.mxu0 0.0
      %341 = vmatpush1.msra.mxu0 0.0
      %342 = vmatprep.subr.mxu0 0.0
      %343 = vmatpush1.msra.mxu0 0.0
      %344 = vmatprep.subr.mxu0 0.0
      %345 = vmatpush1.msra.mxu0 0.0
      %346 = vmatprep.subr.mxu0 0.0
      %347 = vmatpush1.msra.mxu0 0.0
      %348 = vmatprep.subr.mxu0 0.0
      %349 = vmatpush1.msra.mxu0 0.0
      %350 = vmatprep.subr.mxu0 0.0
      %351 = vmatpush1.msra.mxu0 0.0
      %352 = vmatprep.subr.mxu0 0.0
      %353 = vmatpush1.msra.mxu0 0.0
      %354 = vmatprep.subr.mxu0 0.0
      %355 = vmatpush1.msra.mxu0 0.0
      %356 = vmatprep.subr.mxu0 0.0
      %357 = vmatpush1.msra.mxu0 0.0
      %358 = vmatprep.subr.mxu0 0.0
      %359 = vmatpush1.msra.mxu0 0.0
      %360 = vmatprep.subr.mxu0 0.0
      %361 = vmatpush1.msra.mxu0 0.0
      %362 = vmatprep.subr.mxu0 0.0
      %363 = vmatpush1.msra.mxu0 0.0
      %364 = vmatprep.subr.mxu0 0.0
      %365 = vmatpush1.msra.mxu0 0.0
      %366 = vmatprep.subr.mxu0 0.0
      %367 = vmatpush1.msra.mxu0 0.0
      %368 = vmatprep.subr.mxu0 0.0
      %369 = vmatpush1.msra.mxu0 0.0
      %370 = vmatprep.subr.mxu0 0.0
      %371 = vmatpush1.msra.mxu0 0.0
      %372 = vmatprep.subr.mxu0 0.0
      %373 = vmatpush1.msra.mxu0 0.0
      %374 = vmatprep.subr.mxu0 0.0
      %375 = vmatpush1.msra.mxu0 0.0
      %376 = vmatprep.subr.mxu0 0.0
      %377 = vmatpush1.msra.mxu0 0.0
      %378 = vmatprep.subr.mxu0 0.0
      %379 = vmatpush1.msra.mxu0 0.0
      %380 = vmatprep.subr.mxu0 0.0
      %381 = vmatpush1.msra.mxu0 0.0
      %382 = vmatprep.mubr.f32.mxu0 0.0
      %383 = vmatmul.mubr.f32.gmra.mrb[0].mxu0 %v252
      %v384 = vpop.f32.mrb[0].mxu0
      %v385 = vadd.f32 0.0, %v384
      %v386 = vpop.f32.mrb[0].mxu0
      %v387 = vadd.f32 0.0, %v386
      %388 = vmatprep.mubr.f32.mxu0 0.0
      %389 = vmatmul.mubr.f32.gmra.mrb[0].mxu0 %v255
      %v390 = vpop.f32.mrb[0].mxu0
      %v391 = vadd.f32 0.0, %v390
      %v392 = vpop.f32.mrb[0].mxu0
      %v393 = vadd.f32 0.0, %v392
      %394 = vmatprep.mubr.f32.mxu0 0.0
      %395 = vmatmul.mubr.f32.gmra.mrb[0].mxu0 %v258
      %v396 = vpop.f32.mrb[0].mxu0
      %v397 = vadd.f32 0.0, %v396
      %v398 = vpop.f32.mrb[0].mxu0
      %v399 = vadd.f32 0.0, %v398
      %400 = vmatprep.mubr.f32.mxu0 0.0
      %401 = vmatmul.mubr.f32.gmra.mrb[0].mxu0 %v261
      %v402 = vpop.f32.mrb[0].mxu0
      %v403 = vadd.f32 0.0, %v402
      %v404 = vpop.f32.mrb[0].mxu0
      %v405 = vadd.f32 0.0, %v404
      %406 = vmatprep.mubr.f32.mxu0 0.0
      %407 = vmatmul.mubr.f32.gmra.mrb[0].mxu0 %v264
      %v408 = vpop.f32.mrb[0].mxu0
      %v409 = vadd.f32 0.0, %v408
      %v410 = vpop.f32.mrb[0].mxu0
      %v411 = vadd.f32 0.0, %v410
      %412 = vmatprep.mubr.f32.mxu0 0.0
      %413 = vmatmul.mubr.f32.gmra.mrb[0].mxu0 %v267
      %v414 = vpop.f32.mrb[0].mxu0
      %v415 = vadd.f32 0.0, %v414
      %v416 = vpop.f32.mrb[0].mxu0
      %v417 = vadd.f32 0.0, %v416
      %418 = vmatprep.mubr.f32.mxu0 0.0
      %419 = vmatmul.mubr.f32.gmra.mrb[0].mxu0 %v270
      %v420 = vpop.f32.mrb[0].mxu0
      %v421 = vadd.f32 0.0, %v420
      %v422 = vpop.f32.mrb[0].mxu0
      %v423 = vadd.f32 0.0, %v422
      %424 = vmatprep.mubr.f32.mxu0 0.0
      %425 = vmatmul.mubr.f32.gmra.mrb[0].mxu0 %v273
      %v426 = vpop.f32.mrb[0].mxu0
      %v427 = vadd.f32 0.0, %v426
      %v428 = vpop.f32.mrb[0].mxu0
      %v429 = vadd.f32 0.0, %v428
      %430 = vmatprep.mubr.f32.mxu0 0.0
      %431 = vmatmul.mubr.f32.gmra.mrb[0].mxu0 %v276
      %v432 = vpop.f32.mrb[0].mxu0
      %v433 = vadd.f32 0.0, %v432
      %v434 = vpop.f32.mrb[0].mxu0
      %v435 = vadd.f32 0.0, %v434
      %436 = vmatprep.mubr.f32.mxu0 0.0
      %437 = vmatmul.mubr.f32.gmra.mrb[0].mxu0 %v279
      %v438 = vpop.f32.mrb[0].mxu0
      %v439 = vadd.f32 0.0, %v438
      %v440 = vpop.f32.mrb[0].mxu0
      %v441 = vadd.f32 0.0, %v440
      %442 = vmatprep.mubr.f32.mxu0 0.0
      %443 = vmatmul.mubr.f32.gmra.mrb[0].mxu0 %v282
      %v444 = vpop.f32.mrb[0].mxu0
      %v445 = vadd.f32 0.0, %v444
      %v446 = vpop.f32.mrb[0].mxu0
      %v447 = vadd.f32 0.0, %v446
      %448 = vmatprep.mubr.f32.mxu0 0.0
      %449 = vmatmul.mubr.f32.gmra.mrb[0].mxu0 %v285
      %v450 = vpop.f32.mrb[0].mxu0
      %v451 = vadd.f32 0.0, %v450
      %v452 = vpop.f32.mrb[0].mxu0
      %v453 = vadd.f32 0.0, %v452
      %454 = vmatprep.mubr.f32.mxu0 0.0
      %455 = vmatmul.mubr.f32.gmra.mrb[0].mxu0 %v288
      %v456 = vpop.f32.mrb[0].mxu0
      %v457 = vadd.f32 0.0, %v456
      %v458 = vpop.f32.mrb[0].mxu0
      %v459 = vadd.f32 0.0, %v458
      %460 = vmatprep.mubr.f32.mxu0 0.0
      %461 = vmatmul.mubr.f32.gmra.mrb[0].mxu0 %v291
      %v462 = vpop.f32.mrb[0].mxu0
      %v463 = vadd.f32 0.0, %v462
      %v464 = vpop.f32.mrb[0].mxu0
      %v465 = vadd.f32 0.0, %v464
      %466 = vmatprep.mubr.f32.mxu0 0.0
      %467 = vmatmul.mubr.f32.gmra.mrb[0].mxu0 %v294
      %v468 = vpop.f32.mrb[0].mxu0
      %v469 = vadd.f32 0.0, %v468
      %v470 = vpop.f32.mrb[0].mxu0
      %v471 = vadd.f32 0.0, %v470
      %472 = vmatprep.mubr.f32.mxu0 0.0
      %473 = vmatmul.mubr.f32.gmra.mrb[0].mxu0 %v297
      %v474 = vpop.f32.mrb[0].mxu0
      %v475 = vadd.f32 0.0, %v474
      %v476 = vpop.f32.mrb[0].mxu0
      %v477 = vadd.f32 0.0, %v476
      %478 = vdwg.mxu0
      %479 = vmatprep.subr.mxu0 %v310
      %480 = vmatpush1.msra.mxu0 %v307
      %481 = vmatprep.subr.mxu0 0.0
      %482 = vmatpush1.msra.mxu0 0.0
      %483 = vmatprep.subr.mxu0 0.0
      %484 = vmatpush1.msra.mxu0 0.0
      %485 = vmatprep.subr.mxu0 0.0
      %486 = vmatpush1.msra.mxu0 0.0
      %487 = vmatprep.subr.mxu0 0.0
      %488 = vmatpush1.msra.mxu0 0.0
      %489 = vmatprep.subr.mxu0 0.0
      %490 = vmatpush1.msra.mxu0 0.0
      %491 = vmatprep.subr.mxu0 0.0
      %492 = vmatpush1.msra.mxu0 0.0
      %493 = vmatprep.subr.mxu0 0.0
      %494 = vmatpush1.msra.mxu0 0.0
      %495 = vmatprep.subr.mxu0 0.0
      %496 = vmatpush1.msra.mxu0 0.0
      %497 = vmatprep.subr.mxu0 0.0
      %498 = vmatpush1.msra.mxu0 0.0
      %499 = vmatprep.subr.mxu0 0.0
      %500 = vmatpush1.msra.mxu0 0.0
      %501 = vmatprep.subr.mxu0 0.0
      %502 = vmatpush1.msra.mxu0 0.0
      %503 = vmatprep.subr.mxu0 0.0
      %504 = vmatpush1.msra.mxu0 0.0
      %505 = vmatprep.subr.mxu0 0.0
      %506 = vmatpush1.msra.mxu0 0.0
      %507 = vmatprep.subr.mxu0 0.0
      %508 = vmatpush1.msra.mxu0 0.0
      %509 = vmatprep.subr.mxu0 0.0
      %510 = vmatpush1.msra.mxu0 0.0
      %511 = vmatprep.subr.mxu0 0.0
      %512 = vmatpush1.msra.mxu0 0.0
      %513 = vmatprep.subr.mxu0 0.0
      %514 = vmatpush1.msra.mxu0 0.0
      %515 = vmatprep.subr.mxu0 0.0
      %516 = vmatpush1.msra.mxu0 0.0
      %517 = vmatprep.subr.mxu0 0.0
      %518 = vmatpush1.msra.mxu0 0.0
      %519 = vmatprep.subr.mxu0 0.0
      %520 = vmatpush1.msra.mxu0 0.0
      %521 = vmatprep.subr.mxu0 0.0
      %522 = vmatpush1.msra.mxu0 0.0
      %523 = vmatprep.subr.mxu0 0.0
      %524 = vmatpush1.msra.mxu0 0.0
      %525 = vmatprep.subr.mxu0 0.0
      %526 = vmatpush1.msra.mxu0 0.0
      %527 = vmatprep.subr.mxu0 0.0
      %528 = vmatpush1.msra.mxu0 0.0
      %529 = vmatprep.subr.mxu0 0.0
      %530 = vmatpush1.msra.mxu0 0.0
      %531 = vmatprep.subr.mxu0 0.0
      %532 = vmatpush1.msra.mxu0 0.0
      %533 = vmatprep.subr.mxu0 0.0
      %534 = vmatpush1.msra.mxu0 0.0
      %535 = vmatprep.subr.mxu0 0.0
      %536 = vmatpush1.msra.mxu0 0.0
      %537 = vmatprep.subr.mxu0 0.0
      %538 = vmatpush1.msra.mxu0 0.0
      %539 = vmatprep.subr.mxu0 0.0
      %540 = vmatpush1.msra.mxu0 0.0
      %541 = vmatprep.subr.mxu0 0.0
      %542 = vmatpush1.msra.mxu0 0.0
      %543 = vmatprep.mubr.f32.mxu0 0.0
      %544 = vmatmul.mubr.f32.gmra.mrb[0].mxu0 %v252
      %v545 = vpop.f32.mrb[0].mxu0
      %v546 = vadd.f32 0.0, %v545
      %v547 = vpop.f32.mrb[0].mxu0
      %v548 = vadd.f32 0.0, %v547
      %549 = vmatprep.mubr.f32.mxu0 0.0
      %550 = vmatmul.mubr.f32.gmra.mrb[0].mxu0 %v255
      %v551 = vpop.f32.mrb[0].mxu0
      %v552 = vadd.f32 0.0, %v551
      %v553 = vpop.f32.mrb[0].mxu0
      %v554 = vadd.f32 0.0, %v553
      %555 = vmatprep.mubr.f32.mxu0 0.0
      %556 = vmatmul.mubr.f32.gmra.mrb[0].mxu0 %v258
      %v557 = vpop.f32.mrb[0].mxu0
      %v558 = vadd.f32 0.0, %v557
      %v559 = vpop.f32.mrb[0].mxu0
      %v560 = vadd.f32 0.0, %v559
      %561 = vmatprep.mubr.f32.mxu0 0.0
      %562 = vmatmul.mubr.f32.gmra.mrb[0].mxu0 %v261
      %v563 = vpop.f32.mrb[0].mxu0
      %v564 = vadd.f32 0.0, %v563
      %v565 = vpop.f32.mrb[0].mxu0
      %v566 = vadd.f32 0.0, %v565
      %567 = vmatprep.mubr.f32.mxu0 0.0
      %568 = vmatmul.mubr.f32.gmra.mrb[0].mxu0 %v264
      %v569 = vpop.f32.mrb[0].mxu0
      %v570 = vadd.f32 0.0, %v569
      %v571 = vpop.f32.mrb[0].mxu0
      %v572 = vadd.f32 0.0, %v571
      %573 = vmatprep.mubr.f32.mxu0 0.0
      %574 = vmatmul.mubr.f32.gmra.mrb[0].mxu0 %v267
      %v575 = vpop.f32.mrb[0].mxu0
      %v576 = vadd.f32 0.0, %v575
      %v577 = vpop.f32.mrb[0].mxu0
      %v578 = vadd.f32 0.0, %v577
      %579 = vmatprep.mubr.f32.mxu0 0.0
      %580 = vmatmul.mubr.f32.gmra.mrb[0].mxu0 %v270
      %v581 = vpop.f32.mrb[0].mxu0
      %v582 = vadd.f32 0.0, %v581
      %v583 = vpop.f32.mrb[0].mxu0
      %v584 = vadd.f32 0.0, %v583
      %585 = vmatprep.mubr.f32.mxu0 0.0
      %586 = vmatmul.mubr.f32.gmra.mrb[0].mxu0 %v273
      %v587 = vpop.f32.mrb[0].mxu0
      %v588 = vadd.f32 0.0, %v587
      %v589 = vpop.f32.mrb[0].mxu0
      %v590 = vadd.f32 0.0, %v589
      %591 = vmatprep.mubr.f32.mxu0 0.0
      %592 = vmatmul.mubr.f32.gmra.mrb[0].mxu0 %v276
      %v593 = vpop.f32.mrb[0].mxu0
      %v594 = vadd.f32 0.0, %v593
      %v595 = vpop.f32.mrb[0].mxu0
      %v596 = vadd.f32 0.0, %v595
      %597 = vmatprep.mubr.f32.mxu0 0.0
      %598 = vmatmul.mubr.f32.gmra.mrb[0].mxu0 %v279
      %v599 = vpop.f32.mrb[0].mxu0
      %v600 = vadd.f32 0.0, %v599
      %v601 = vpop.f32.mrb[0].mxu0
      %v602 = vadd.f32 0.0, %v601
      %603 = vmatprep.mubr.f32.mxu0 0.0
      %604 = vmatmul.mubr.f32.gmra.mrb[0].mxu0 %v282
      %v605 = vpop.f32.mrb[0].mxu0
      %v606 = vadd.f32 0.0, %v605
      %v607 = vpop.f32.mrb[0].mxu0
      %v608 = vadd.f32 0.0, %v607
      %609 = vmatprep.mubr.f32.mxu0 0.0
      %610 = vmatmul.mubr.f32.gmra.mrb[0].mxu0 %v285
      %v611 = vpop.f32.mrb[0].mxu0
      %v612 = vadd.f32 0.0, %v611
      %v613 = vpop.f32.mrb[0].mxu0
      %v614 = vadd.f32 0.0, %v613
      %615 = vmatprep.mubr.f32.mxu0 0.0
      %616 = vmatmul.mubr.f32.gmra.mrb[0].mxu0 %v288
      %v617 = vpop.f32.mrb[0].mxu0
      %v618 = vadd.f32 0.0, %v617
      %v619 = vpop.f32.mrb[0].mxu0
      %v620 = vadd.f32 0.0, %v619
      %621 = vmatprep.mubr.f32.mxu0 0.0
      %622 = vmatmul.mubr.f32.gmra.mrb[0].mxu0 %v291
      %v623 = vpop.f32.mrb[0].mxu0
      %v624 = vadd.f32 0.0, %v623
      %v625 = vpop.f32.mrb[0].mxu0
      %v626 = vadd.f32 0.0, %v625
      %627 = vmatprep.mubr.f32.mxu0 0.0
      %628 = vmatmul.mubr.f32.gmra.mrb[0].mxu0 %v294
      %v629 = vpop.f32.mrb[0].mxu0
      %v630 = vadd.f32 0.0, %v629
      %v631 = vpop.f32.mrb[0].mxu0
      %v632 = vadd.f32 0.0, %v631
      %633 = vmatprep.mubr.f32.mxu0 0.0
      %634 = vmatmul.mubr.f32.gmra.mrb[0].mxu0 %v297
      %v635 = vpop.f32.mrb[0].mxu0
      %v636 = vadd.f32 0.0, %v635
      %v637 = vpop.f32.mrb[0].mxu0
      %v638 = vadd.f32 0.0, %v637
      %639 = vdwg.mxu0
      %640 = vmatprep.subr.mxu0 %v316
      %641 = vmatpush1.msra.mxu0 %v313
      %642 = vmatprep.subr.mxu0 0.0
      %643 = vmatpush1.msra.mxu0 0.0
      %644 = vmatprep.subr.mxu0 0.0
      %645 = vmatpush1.msra.mxu0 0.0
      %646 = vmatprep.subr.mxu0 0.0
      %647 = vmatpush1.msra.mxu0 0.0
      %648 = vmatprep.subr.mxu0 0.0
      %649 = vmatpush1.msra.mxu0 0.0
      %650 = vmatprep.subr.mxu0 0.0
      %651 = vmatpush1.msra.mxu0 0.0
      %652 = vmatprep.subr.mxu0 0.0
      %653 = vmatpush1.msra.mxu0 0.0
      %654 = vmatprep.subr.mxu0 0.0
      %655 = vmatpush1.msra.mxu0 0.0
      %656 = vmatprep.subr.mxu0 0.0
      %657 = vmatpush1.msra.mxu0 0.0
      %658 = vmatprep.subr.mxu0 0.0
      %659 = vmatpush1.msra.mxu0 0.0
      %660 = vmatprep.subr.mxu0 0.0
      %661 = vmatpush1.msra.mxu0 0.0
      %662 = vmatprep.subr.mxu0 0.0
      %663 = vmatpush1.msra.mxu0 0.0
      %664 = vmatprep.subr.mxu0 0.0
      %665 = vmatpush1.msra.mxu0 0.0
      %666 = vmatprep.subr.mxu0 0.0
      %667 = vmatpush1.msra.mxu0 0.0
      %668 = vmatprep.subr.mxu0 0.0
      %669 = vmatpush1.msra.mxu0 0.0
      %670 = vmatprep.subr.mxu0 0.0
      %671 = vmatpush1.msra.mxu0 0.0
      %672 = vmatprep.subr.mxu0 0.0
      %673 = vmatpush1.msra.mxu0 0.0
      %674 = vmatprep.subr.mxu0 0.0
      %675 = vmatpush1.msra.mxu0 0.0
      %676 = vmatprep.subr.mxu0 0.0
      %677 = vmatpush1.msra.mxu0 0.0
      %678 = vmatprep.subr.mxu0 0.0
      %679 = vmatpush1.msra.mxu0 0.0
      %680 = vmatprep.subr.mxu0 0.0
      %681 = vmatpush1.msra.mxu0 0.0
      %682 = vmatprep.subr.mxu0 0.0
      %683 = vmatpush1.msra.mxu0 0.0
      %684 = vmatprep.subr.mxu0 0.0
      %685 = vmatpush1.msra.mxu0 0.0
      %686 = vmatprep.subr.mxu0 0.0
      %687 = vmatpush1.msra.mxu0 0.0
      %688 = vmatprep.subr.mxu0 0.0
      %689 = vmatpush1.msra.mxu0 0.0
      %690 = vmatprep.subr.mxu0 0.0
      %691 = vmatpush1.msra.mxu0 0.0
      %692 = vmatprep.subr.mxu0 0.0
      %693 = vmatpush1.msra.mxu0 0.0
      %694 = vmatprep.subr.mxu0 0.0
      %695 = vmatpush1.msra.mxu0 0.0
      %696 = vmatprep.subr.mxu0 0.0
      %697 = vmatpush1.msra.mxu0 0.0
      %698 = vmatprep.subr.mxu0 0.0
      %699 = vmatpush1.msra.mxu0 0.0
      %700 = vmatprep.subr.mxu0 0.0
      %701 = vmatpush1.msra.mxu0 0.0
      %702 = vmatprep.subr.mxu0 0.0
      %703 = vmatpush1.msra.mxu0 0.0
      %704 = vmatprep.mubr.f32.mxu0 0.0
      %705 = vmatmul.mubr.f32.gmra.mrb[0].mxu0 %v252
      %v706 = vpop.f32.mrb[0].mxu0
      %v707 = vadd.f32 0.0, %v706
      %v708 = vpop.f32.mrb[0].mxu0
      %v709 = vadd.f32 0.0, %v708
      %710 = vmatprep.mubr.f32.mxu0 0.0
      %711 = vmatmul.mubr.f32.gmra.mrb[0].mxu0 %v255
      %v712 = vpop.f32.mrb[0].mxu0
      %v713 = vadd.f32 0.0, %v712
      %v714 = vpop.f32.mrb[0].mxu0
      %v715 = vadd.f32 0.0, %v714
      %716 = vmatprep.mubr.f32.mxu0 0.0
      %717 = vmatmul.mubr.f32.gmra.mrb[0].mxu0 %v258
      %v718 = vpop.f32.mrb[0].mxu0
      %v719 = vadd.f32 0.0, %v718
      %v720 = vpop.f32.mrb[0].mxu0
      %v721 = vadd.f32 0.0, %v720
      %722 = vmatprep.mubr.f32.mxu0 0.0
      %723 = vmatmul.mubr.f32.gmra.mrb[0].mxu0 %v261
      %v724 = vpop.f32.mrb[0].mxu0
      %v725 = vadd.f32 0.0, %v724
      %v726 = vpop.f32.mrb[0].mxu0
      %v727 = vadd.f32 0.0, %v726
      %728 = vmatprep.mubr.f32.mxu0 0.0
      %729 = vmatmul.mubr.f32.gmra.mrb[0].mxu0 %v264
      %v730 = vpop.f32.mrb[0].mxu0
      %v731 = vadd.f32 0.0, %v730
      %v732 = vpop.f32.mrb[0].mxu0
      %v733 = vadd.f32 0.0, %v732
      %734 = vmatprep.mubr.f32.mxu0 0.0
      %735 = vmatmul.mubr.f32.gmra.mrb[0].mxu0 %v267
      %v736 = vpop.f32.mrb[0].mxu0
      %v737 = vadd.f32 0.0, %v736
      %v738 = vpop.f32.mrb[0].mxu0
      %v739 = vadd.f32 0.0, %v738
      %740 = vmatprep.mubr.f32.mxu0 0.0
      %741 = vmatmul.mubr.f32.gmra.mrb[0].mxu0 %v270
      %v742 = vpop.f32.mrb[0].mxu0
      %v743 = vadd.f32 0.0, %v742
      %v744 = vpop.f32.mrb[0].mxu0
      %v745 = vadd.f32 0.0, %v744
      %746 = vmatprep.mubr.f32.mxu0 0.0
      %747 = vmatmul.mubr.f32.gmra.mrb[0].mxu0 %v273
      %v748 = vpop.f32.mrb[0].mxu0
      %v749 = vadd.f32 0.0, %v748
      %v750 = vpop.f32.mrb[0].mxu0
      %v751 = vadd.f32 0.0, %v750
      %752 = vmatprep.mubr.f32.mxu0 0.0
      %753 = vmatmul.mubr.f32.gmra.mrb[0].mxu0 %v276
      %v754 = vpop.f32.mrb[0].mxu0
      %v755 = vadd.f32 0.0, %v754
      %v756 = vpop.f32.mrb[0].mxu0
      %v757 = vadd.f32 0.0, %v756
      %758 = vmatprep.mubr.f32.mxu0 0.0
      %759 = vmatmul.mubr.f32.gmra.mrb[0].mxu0 %v279
      %v760 = vpop.f32.mrb[0].mxu0
      %v761 = vadd.f32 0.0, %v760
      %v762 = vpop.f32.mrb[0].mxu0
      %v763 = vadd.f32 0.0, %v762
      %764 = vmatprep.mubr.f32.mxu0 0.0
      %765 = vmatmul.mubr.f32.gmra.mrb[0].mxu0 %v282
      %v766 = vpop.f32.mrb[0].mxu0
      %v767 = vadd.f32 0.0, %v766
      %v768 = vpop.f32.mrb[0].mxu0
      %v769 = vadd.f32 0.0, %v768
      %770 = vmatprep.mubr.f32.mxu0 0.0
      %771 = vmatmul.mubr.f32.gmra.mrb[0].mxu0 %v285
      %v772 = vpop.f32.mrb[0].mxu0
      %v773 = vadd.f32 0.0, %v772
      %v774 = vpop.f32.mrb[0].mxu0
      %v775 = vadd.f32 0.0, %v774
      %776 = vmatprep.mubr.f32.mxu0 0.0
      %777 = vmatmul.mubr.f32.gmra.mrb[0].mxu0 %v288
      %v778 = vpop.f32.mrb[0].mxu0
      %v779 = vadd.f32 0.0, %v778
      %v780 = vpop.f32.mrb[0].mxu0
      %v781 = vadd.f32 0.0, %v780
      %782 = vmatprep.mubr.f32.mxu0 0.0
      %783 = vmatmul.mubr.f32.gmra.mrb[0].mxu0 %v291
      %v784 = vpop.f32.mrb[0].mxu0
      %v785 = vadd.f32 0.0, %v784
      %v786 = vpop.f32.mrb[0].mxu0
      %v787 = vadd.f32 0.0, %v786
      %788 = vmatprep.mubr.f32.mxu0 0.0
      %789 = vmatmul.mubr.f32.gmra.mrb[0].mxu0 %v294
      %v790 = vpop.f32.mrb[0].mxu0
      %v791 = vadd.f32 0.0, %v790
      %v792 = vpop.f32.mrb[0].mxu0
      %v793 = vadd.f32 0.0, %v792
      %794 = vmatprep.mubr.f32.mxu0 0.0
      %795 = vmatmul.mubr.f32.gmra.mrb[0].mxu0 %v297
      %v796 = vpop.f32.mrb[0].mxu0
      %v797 = vadd.f32 0.0, %v796
      %v798 = vpop.f32.mrb[0].mxu0
      %v799 = vadd.f32 0.0, %v798
      %800 = vdwg.mxu0
      %v801 = vmul.f32 %v385, %v546
      %v802 = vmul.f32 %v387, %v548
      %v803 = vmul.f32 %v391, %v552
      %v804 = vmul.f32 %v393, %v554
      %v805 = vmul.f32 %v397, %v558
      %v806 = vmul.f32 %v399, %v560
      %v807 = vmul.f32 %v403, %v564
      %v808 = vmul.f32 %v405, %v566
      %v809 = vmul.f32 %v409, %v570
      %v810 = vmul.f32 %v411, %v572
      %v811 = vmul.f32 %v415, %v576
      %v812 = vmul.f32 %v417, %v578
      %v813 = vmul.f32 %v421, %v582
      %v814 = vmul.f32 %v423, %v584
      %v815 = vmul.f32 %v427, %v588
      %v816 = vmul.f32 %v429, %v590
      %v817 = vmul.f32 %v433, %v594
      %v818 = vmul.f32 %v435, %v596
      %v819 = vmul.f32 %v439, %v600
      %v820 = vmul.f32 %v441, %v602
      %v821 = vmul.f32 %v445, %v606
      %v822 = vmul.f32 %v447, %v608
      %v823 = vmul.f32 %v451, %v612
      %v824 = vmul.f32 %v453, %v614
      %v825 = vmul.f32 %v457, %v618
      %v826 = vmul.f32 %v459, %v620
      %v827 = vmul.f32 %v463, %v624
      %v828 = vmul.f32 %v465, %v626
      %v829 = vmul.f32 %v469, %v630
      %v830 = vmul.f32 %v471, %v632
      %v831 = vmul.f32 %v475, %v636
      %v832 = vmul.f32 %v477, %v638
      %v833 = vmul.f32 %v801, %v707
      %v834 = vmul.f32 %v802, %v709
      %v835 = vmul.f32 %v803, %v713
      %v836 = vmul.f32 %v804, %v715
      %v837 = vmul.f32 %v805, %v719
      %v838 = vmul.f32 %v806, %v721
      %v839 = vmul.f32 %v807, %v725
      %v840 = vmul.f32 %v808, %v727
      %v841 = vmul.f32 %v809, %v731
      %v842 = vmul.f32 %v810, %v733
      %v843 = vmul.f32 %v811, %v737
      %v844 = vmul.f32 %v812, %v739
      %v845 = vmul.f32 %v813, %v743
      %v846 = vmul.f32 %v814, %v745
      %v847 = vmul.f32 %v815, %v749
      %v848 = vmul.f32 %v816, %v751
      %v849 = vmul.f32 %v817, %v755
      %v850 = vmul.f32 %v818, %v757
      %v851 = vmul.f32 %v819, %v761
      %v852 = vmul.f32 %v820, %v763
      %v853 = vmul.f32 %v821, %v767
      %v854 = vmul.f32 %v822, %v769
      %v855 = vmul.f32 %v823, %v773
      %v856 = vmul.f32 %v824, %v775
      %v857 = vmul.f32 %v825, %v779
      %v858 = vmul.f32 %v826, %v781
      %v859 = vmul.f32 %v827, %v785
      %v860 = vmul.f32 %v828, %v787
      %v861 = vmul.f32 %v829, %v791
      %v862 = vmul.f32 %v830, %v793
      %v863 = vmul.f32 %v831, %v797
      %v864 = vmul.f32 %v832, %v799
      %v865 = vld [vmem:[%s2] sm:$0xff]
      %v866 = vld [vmem:[%s2 + $0x8] sm:$0xff]
      %v867 = vld [vmem:[%s2 + $0x10] sm:$0xff]
      %v868 = vld [vmem:[%s2 + $0x18] sm:$0xff]
      %v869 = vld [vmem:[%s2 + $0x20] sm:$0xff]
      %v870 = vld [vmem:[%s2 + $0x28] sm:$0xff]
      %v871 = vld [vmem:[%s2 + $0x30] sm:$0xff]
      %v872 = vld [vmem:[%s2 + $0x38] sm:$0xff]
      %v873 = vld [vmem:[%s2 + $0x40] sm:$0xff]
      %v874 = vld [vmem:[%s2 + $0x48] sm:$0xff]
      %v875 = vld [vmem:[%s2 + $0x50] sm:$0xff]
      %v876 = vld [vmem:[%s2 + $0x58] sm:$0xff]
      %v877 = vld [vmem:[%s2 + $0x60] sm:$0xff]
      %v878 = vld [vmem:[%s2 + $0x68] sm:$0xff]
      %v879 = vld [vmem:[%s2 + $0x70] sm:$0xff]
      %v880 = vld [vmem:[%s2 + $0x78] sm:$0xff]
      %v881 = vld [vmem:[%s2 + $0x80] sm:$0xff]
      %v882 = vld [vmem:[%s2 + $0x88] sm:$0xff]
      %v883 = vld [vmem:[%s2 + $0x90] sm:$0xff]
      %v884 = vld [vmem:[%s2 + $0x98] sm:$0xff]
      %v885 = vld [vmem:[%s2 + $0xa0] sm:$0xff]
      %v886 = vld [vmem:[%s2 + $0xa8] sm:$0xff]
      %v887 = vld [vmem:[%s2 + $0xb0] sm:$0xff]
      %v888 = vld [vmem:[%s2 + $0xb8] sm:$0xff]
      %v889 = vld [vmem:[%s2 + $0xc0] sm:$0xff]
      %v890 = vld [vmem:[%s2 + $0xc8] sm:$0xff]
      %v891 = vld [vmem:[%s2 + $0xd0] sm:$0xff]
      %v892 = vld [vmem:[%s2 + $0xd8] sm:$0xff]
      %v893 = vld [vmem:[%s2 + $0xe0] sm:$0xff]
      %v894 = vld [vmem:[%s2 + $0xe8] sm:$0xff]
      %v895 = vld [vmem:[%s2 + $0xf0] sm:$0xff]
      %v896 = vld [vmem:[%s2 + $0xf8] sm:$0xff]
      %v897 = vld [vmem:[%s2 + $0x100] sm:$0xff]
      %v898 = vld [vmem:[%s2 + $0x108] sm:$0xff]
      %v899 = vld [vmem:[%s2 + $0x110] sm:$0xff]
      %v900 = vld [vmem:[%s2 + $0x118] sm:$0xff]
      %v901 = vld [vmem:[%s2 + $0x120] sm:$0xff]
      %v902 = vld [vmem:[%s2 + $0x128] sm:$0xff]
      %v903 = vld [vmem:[%s2 + $0x130] sm:$0xff]
      %v904 = vld [vmem:[%s2 + $0x138] sm:$0xff]
      %v905 = vld [vmem:[%s2 + $0x140] sm:$0xff]
      %v906 = vld [vmem:[%s2 + $0x148] sm:$0xff]
      %v907 = vld [vmem:[%s2 + $0x150] sm:$0xff]
      %v908 = vld [vmem:[%s2 + $0x158] sm:$0xff]
      %v909 = vld [vmem:[%s2 + $0x160] sm:$0xff]
      %v910 = vld [vmem:[%s2 + $0x168] sm:$0xff]
      %v911 = vld [vmem:[%s2 + $0x170] sm:$0xff]
      %v912 = vld [vmem:[%s2 + $0x178] sm:$0xff]
      %v913 = vld [vmem:[%s2 + $0x180] sm:$0xff]
      %v914 = vld [vmem:[%s2 + $0x188] sm:$0xff]
      %v915 = vld [vmem:[%s2 + $0x190] sm:$0xff]
      %v916 = vld [vmem:[%s2 + $0x198] sm:$0xff]
      %v917 = vld [vmem:[%s2 + $0x1a0] sm:$0xff]
      %v918 = vld [vmem:[%s2 + $0x1a8] sm:$0xff]
      %v919 = vld [vmem:[%s2 + $0x1b0] sm:$0xff]
      %v920 = vld [vmem:[%s2 + $0x1b8] sm:$0xff]
      %v921 = vld [vmem:[%s2 + $0x1c0] sm:$0xff]
      %v922 = vld [vmem:[%s2 + $0x1c8] sm:$0xff]
      %v923 = vld [vmem:[%s2 + $0x1d0] sm:$0xff]
      %v924 = vld [vmem:[%s2 + $0x1d8] sm:$0xff]
      %v925 = vld [vmem:[%s2 + $0x1e0] sm:$0xff]
      %v926 = vld [vmem:[%s2 + $0x1e8] sm:$0xff]
      %v927 = vld [vmem:[%s2 + $0x1f0] sm:$0xff]
      %v928 = vld [vmem:[%s2 + $0x1f8] sm:$0xff]
      %929 = vmatprep.subr.mxu0 %v866
      %930 = vmatpush1.msra.mxu0 %v865
      %931 = vmatprep.subr.mxu0 %v868
      %932 = vmatpush1.msra.mxu0 %v867
      %933 = vmatprep.subr.mxu0 %v870
      %934 = vmatpush1.msra.mxu0 %v869
      %935 = vmatprep.subr.mxu0 %v872
      %936 = vmatpush1.msra.mxu0 %v871
      %937 = vmatprep.subr.mxu0 %v874
      %938 = vmatpush1.msra.mxu0 %v873
      %939 = vmatprep.subr.mxu0 %v876
      %940 = vmatpush1.msra.mxu0 %v875
      %941 = vmatprep.subr.mxu0 %v878
      %942 = vmatpush1.msra.mxu0 %v877
      %943 = vmatprep.subr.mxu0 %v880
      %944 = vmatpush1.msra.mxu0 %v879
      %945 = vmatprep.subr.mxu0 %v882
      %946 = vmatpush1.msra.mxu0 %v881
      %947 = vmatprep.subr.mxu0 %v884
      %948 = vmatpush1.msra.mxu0 %v883
      %949 = vmatprep.subr.mxu0 %v886
      %950 = vmatpush1.msra.mxu0 %v885
      %951 = vmatprep.subr.mxu0 %v888
      %952 = vmatpush1.msra.mxu0 %v887
      %953 = vmatprep.subr.mxu0 %v890
      %954 = vmatpush1.msra.mxu0 %v889
      %955 = vmatprep.subr.mxu0 %v892
      %956 = vmatpush1.msra.mxu0 %v891
      %957 = vmatprep.subr.mxu0 %v894
      %958 = vmatpush1.msra.mxu0 %v893
      %959 = vmatprep.subr.mxu0 %v896
      %960 = vmatpush1.msra.mxu0 %v895
      %961 = vmatprep.subr.mxu0 %v898
      %962 = vmatpush1.msra.mxu0 %v897
      %963 = vmatprep.subr.mxu0 %v900
      %964 = vmatpush1.msra.mxu0 %v899
      %965 = vmatprep.subr.mxu0 %v902
      %966 = vmatpush1.msra.mxu0 %v901
      %967 = vmatprep.subr.mxu0 %v904
      %968 = vmatpush1.msra.mxu0 %v903
      %969 = vmatprep.subr.mxu0 %v906
      %970 = vmatpush1.msra.mxu0 %v905
      %971 = vmatprep.subr.mxu0 %v908
      %972 = vmatpush1.msra.mxu0 %v907
      %973 = vmatprep.subr.mxu0 %v910
      %974 = vmatpush1.msra.mxu0 %v909
      %975 = vmatprep.subr.mxu0 %v912
      %976 = vmatpush1.msra.mxu0 %v911
      %977 = vmatprep.subr.mxu0 %v914
      %978 = vmatpush1.msra.mxu0 %v913
      %979 = vmatprep.subr.mxu0 %v916
      %980 = vmatpush1.msra.mxu0 %v915
      %981 = vmatprep.subr.mxu0 %v918
      %982 = vmatpush1.msra.mxu0 %v917
      %983 = vmatprep.subr.mxu0 %v920
      %984 = vmatpush1.msra.mxu0 %v919
      %985 = vmatprep.subr.mxu0 %v922
      %986 = vmatpush1.msra.mxu0 %v921
      %987 = vmatprep.subr.mxu0 %v924
      %988 = vmatpush1.msra.mxu0 %v923
      %989 = vmatprep.subr.mxu0 %v926
      %990 = vmatpush1.msra.mxu0 %v925
      %991 = vmatprep.subr.mxu0 %v928
      %992 = vmatpush1.msra.mxu0 %v927
      %993 = vmatprep.mubr.f32.mxu0 %v834
      %994 = vmatmul.mubr.f32.gmra.mrb[0].mxu0 %v833
      %v995 = vpop.f32.mrb[0].mxu0
      %v996 = vadd.f32 0.0, %v995
      %v997 = vpop.f32.mrb[0].mxu0
      %v998 = vadd.f32 0.0, %v997
      %999 = vmatprep.mubr.f32.mxu0 %v836
      %1000 = vmatmul.mubr.f32.gmra.mrb[0].mxu0 %v835
      %v1001 = vpop.f32.mrb[0].mxu0
      %v1002 = vadd.f32 0.0, %v1001
      %v1003 = vpop.f32.mrb[0].mxu0
      %v1004 = vadd.f32 0.0, %v1003
      %1005 = vmatprep.mubr.f32.mxu0 %v838
      %1006 = vmatmul.mubr.f32.gmra.mrb[0].mxu0 %v837
      %v1007 = vpop.f32.mrb[0].mxu0
      %v1008 = vadd.f32 0.0, %v1007
      %v1009 = vpop.f32.mrb[0].mxu0
      %v1010 = vadd.f32 0.0, %v1009
      %1011 = vmatprep.mubr.f32.mxu0 %v840
      %1012 = vmatmul.mubr.f32.gmra.mrb[0].mxu0 %v839
      %v1013 = vpop.f32.mrb[0].mxu0
      %v1014 = vadd.f32 0.0, %v1013
      %v1015 = vpop.f32.mrb[0].mxu0
      %v1016 = vadd.f32 0.0, %v1015
      %1017 = vmatprep.mubr.f32.mxu0 %v842
      %1018 = vmatmul.mubr.f32.gmra.mrb[0].mxu0 %v841
      %v1019 = vpop.f32.mrb[0].mxu0
      %v1020 = vadd.f32 0.0, %v1019
      %v1021 = vpop.f32.mrb[0].mxu0
      %v1022 = vadd.f32 0.0, %v1021
      %1023 = vmatprep.mubr.f32.mxu0 %v844
      %1024 = vmatmul.mubr.f32.gmra.mrb[0].mxu0 %v843
      %v1025 = vpop.f32.mrb[0].mxu0
      %v1026 = vadd.f32 0.0, %v1025
      %v1027 = vpop.f32.mrb[0].mxu0
      %v1028 = vadd.f32 0.0, %v1027
      %1029 = vmatprep.mubr.f32.mxu0 %v846
      %1030 = vmatmul.mubr.f32.gmra.mrb[0].mxu0 %v845
      %v1031 = vpop.f32.mrb[0].mxu0
      %v1032 = vadd.f32 0.0, %v1031
      %v1033 = vpop.f32.mrb[0].mxu0
      %v1034 = vadd.f32 0.0, %v1033
      %1035 = vmatprep.mubr.f32.mxu0 %v848
      %1036 = vmatmul.mubr.f32.gmra.mrb[0].mxu0 %v847
      %v1037 = vpop.f32.mrb[0].mxu0
      %v1038 = vadd.f32 0.0, %v1037
      %v1039 = vpop.f32.mrb[0].mxu0
      %v1040 = vadd.f32 0.0, %v1039
      %1041 = vmatprep.mubr.f32.mxu0 %v850
      %1042 = vmatmul.mubr.f32.gmra.mrb[0].mxu0 %v849
      %v1043 = vpop.f32.mrb[0].mxu0
      %v1044 = vadd.f32 0.0, %v1043
      %v1045 = vpop.f32.mrb[0].mxu0
      %v1046 = vadd.f32 0.0, %v1045
      %1047 = vmatprep.mubr.f32.mxu0 %v852
      %1048 = vmatmul.mubr.f32.gmra.mrb[0].mxu0 %v851
      %v1049 = vpop.f32.mrb[0].mxu0
      %v1050 = vadd.f32 0.0, %v1049
      %v1051 = vpop.f32.mrb[0].mxu0
      %v1052 = vadd.f32 0.0, %v1051
      %1053 = vmatprep.mubr.f32.mxu0 %v854
      %1054 = vmatmul.mubr.f32.gmra.mrb[0].mxu0 %v853
      %v1055 = vpop.f32.mrb[0].mxu0
      %v1056 = vadd.f32 0.0, %v1055
      %v1057 = vpop.f32.mrb[0].mxu0
      %v1058 = vadd.f32 0.0, %v1057
      %1059 = vmatprep.mubr.f32.mxu0 %v856
      %1060 = vmatmul.mubr.f32.gmra.mrb[0].mxu0 %v855
      %v1061 = vpop.f32.mrb[0].mxu0
      %v1062 = vadd.f32 0.0, %v1061
      %v1063 = vpop.f32.mrb[0].mxu0
      %v1064 = vadd.f32 0.0, %v1063
      %1065 = vmatprep.mubr.f32.mxu0 %v858
      %1066 = vmatmul.mubr.f32.gmra.mrb[0].mxu0 %v857
      %v1067 = vpop.f32.mrb[0].mxu0
      %v1068 = vadd.f32 0.0, %v1067
      %v1069 = vpop.f32.mrb[0].mxu0
      %v1070 = vadd.f32 0.0, %v1069
      %1071 = vmatprep.mubr.f32.mxu0 %v860
      %1072 = vmatmul.mubr.f32.gmra.mrb[0].mxu0 %v859
      %v1073 = vpop.f32.mrb[0].mxu0
      %v1074 = vadd.f32 0.0, %v1073
      %v1075 = vpop.f32.mrb[0].mxu0
      %v1076 = vadd.f32 0.0, %v1075
      %1077 = vmatprep.mubr.f32.mxu0 %v862
      %1078 = vmatmul.mubr.f32.gmra.mrb[0].mxu0 %v861
      %v1079 = vpop.f32.mrb[0].mxu0
      %v1080 = vadd.f32 0.0, %v1079
      %v1081 = vpop.f32.mrb[0].mxu0
      %v1082 = vadd.f32 0.0, %v1081
      %1083 = vmatprep.mubr.f32.mxu0 %v864
      %1084 = vmatmul.mubr.f32.gmra.mrb[0].mxu0 %v863
      %v1085 = vpop.f32.mrb[0].mxu0
      %v1086 = vadd.f32 0.0, %v1085
      %v1087 = vpop.f32.mrb[0].mxu0
      %v1088 = vadd.f32 0.0, %v1087
      %1089 = vdwg.mxu0
      %v1090 = vxor.u32 %v998, 2147483648
      %v1091 = vxor.u32 %v1004, 2147483648
      %v1092 = vxor.u32 %v1010, 2147483648
      %v1093 = vxor.u32 %v1016, 2147483648
      %v1094 = vxor.u32 %v1022, 2147483648
      %v1095 = vxor.u32 %v1028, 2147483648
      %v1096 = vxor.u32 %v1034, 2147483648
      %v1097 = vxor.u32 %v1040, 2147483648
      %v1098 = vxor.u32 %v1046, 2147483648
      %v1099 = vxor.u32 %v1052, 2147483648
      %v1100 = vxor.u32 %v1058, 2147483648
      %v1101 = vxor.u32 %v1064, 2147483648
      %v1102 = vxor.u32 %v1070, 2147483648
      %v1103 = vxor.u32 %v1076, 2147483648
      %v1104 = vxor.u32 %v1082, 2147483648
      %v1105 = vxor.u32 %v1088, 2147483648
      %v1106 = vmul.f32 %v1090, 1.442695
      %v1107 = vpow.pop %v1106
      %v1108 = vmul.f32 %v1091, 1.442695
      %v1109 = vpow.pop %v1108
      %v1110 = vmul.f32 %v1092, 1.442695
      %v1111 = vpow.pop %v1110
      %v1112 = vmul.f32 %v1093, 1.442695
      %v1113 = vpow.pop %v1112
      %v1114 = vmul.f32 %v1094, 1.442695
      %v1115 = vpow.pop %v1114
      %v1116 = vmul.f32 %v1095, 1.442695
      %v1117 = vpow.pop %v1116
      %v1118 = vmul.f32 %v1096, 1.442695
      %v1119 = vpow.pop %v1118
      %v1120 = vmul.f32 %v1097, 1.442695
      %v1121 = vpow.pop %v1120
      %v1122 = vmul.f32 %v1098, 1.442695
      %v1123 = vpow.pop %v1122
      %v1124 = vmul.f32 %v1099, 1.442695
      %v1125 = vpow.pop %v1124
      %v1126 = vmul.f32 %v1100, 1.442695
      %v1127 = vpow.pop %v1126
      %v1128 = vmul.f32 %v1101, 1.442695
      %v1129 = vpow.pop %v1128
      %v1130 = vmul.f32 %v1102, 1.442695
      %v1131 = vpow.pop %v1130
      %v1132 = vmul.f32 %v1103, 1.442695
      %v1133 = vpow.pop %v1132
      %v1134 = vmul.f32 %v1104, 1.442695
      %v1135 = vpow.pop %v1134
      %v1136 = vmul.f32 %v1105, 1.442695
      %v1137 = vpow.pop %v1136
      %v1138 = vadd.f32 %v1107, 1.0
      %v1139 = vadd.f32 %v1109, 1.0
      %v1140 = vadd.f32 %v1111, 1.0
      %v1141 = vadd.f32 %v1113, 1.0
      %v1142 = vadd.f32 %v1115, 1.0
      %v1143 = vadd.f32 %v1117, 1.0
      %v1144 = vadd.f32 %v1119, 1.0
      %v1145 = vadd.f32 %v1121, 1.0
      %v1146 = vadd.f32 %v1123, 1.0
      %v1147 = vadd.f32 %v1125, 1.0
      %v1148 = vadd.f32 %v1127, 1.0
      %v1149 = vadd.f32 %v1129, 1.0
      %v1150 = vadd.f32 %v1131, 1.0
      %v1151 = vadd.f32 %v1133, 1.0
      %v1152 = vadd.f32 %v1135, 1.0
      %v1153 = vadd.f32 %v1137, 1.0
      %v1154 = vrcp.pop %v1138
      %v1155 = vmul.f32 1.0, %v1154
      %v1156 = vrcp.pop %v1139
      %v1157 = vmul.f32 1.0, %v1156
      %v1158 = vrcp.pop %v1140
      %v1159 = vmul.f32 1.0, %v1158
      %v1160 = vrcp.pop %v1141
      %v1161 = vmul.f32 1.0, %v1160
      %v1162 = vrcp.pop %v1142
      %v1163 = vmul.f32 1.0, %v1162
      %v1164 = vrcp.pop %v1143
      %v1165 = vmul.f32 1.0, %v1164
      %v1166 = vrcp.pop %v1144
      %v1167 = vmul.f32 1.0, %v1166
      %v1168 = vrcp.pop %v1145
      %v1169 = vmul.f32 1.0, %v1168
      %v1170 = vrcp.pop %v1146
      %v1171 = vmul.f32 1.0, %v1170
      %v1172 = vrcp.pop %v1147
      %v1173 = vmul.f32 1.0, %v1172
      %v1174 = vrcp.pop %v1148
      %v1175 = vmul.f32 1.0, %v1174
      %v1176 = vrcp.pop %v1149
      %v1177 = vmul.f32 1.0, %v1176
      %v1178 = vrcp.pop %v1150
      %v1179 = vmul.f32 1.0, %v1178
      %v1180 = vrcp.pop %v1151
      %v1181 = vmul.f32 1.0, %v1180
      %v1182 = vrcp.pop %v1152
      %v1183 = vmul.f32 1.0, %v1182
      %v1184 = vrcp.pop %v1153
      %v1185 = vmul.f32 1.0, %v1184
      %v1186 = vmul.f32 %v996, %v1155
      %v1187 = vmul.f32 %v1002, %v1157
      %v1188 = vmul.f32 %v1008, %v1159
      %v1189 = vmul.f32 %v1014, %v1161
      %v1190 = vmul.f32 %v1020, %v1163
      %v1191 = vmul.f32 %v1026, %v1165
      %v1192 = vmul.f32 %v1032, %v1167
      %v1193 = vmul.f32 %v1038, %v1169
      %v1194 = vmul.f32 %v1044, %v1171
      %v1195 = vmul.f32 %v1050, %v1173
      %v1196 = vmul.f32 %v1056, %v1175
      %v1197 = vmul.f32 %v1062, %v1177
      %v1198 = vmul.f32 %v1068, %v1179
      %v1199 = vmul.f32 %v1074, %v1181
      %v1200 = vmul.f32 %v1080, %v1183
      %v1201 = vmul.f32 %v1086, %v1185
      %v1202 = vld [vmem:[%s3] sm:$0xff]
      %v1203 = vld [vmem:[%s3 + $0x8] sm:$0xff]
      %v1204 = vld [vmem:[%s3 + $0x10] sm:$0xff]
      %v1205 = vld [vmem:[%s3 + $0x18] sm:$0xff]
      %v1206 = vld [vmem:[%s3 + $0x20] sm:$0xff]
      %v1207 = vld [vmem:[%s3 + $0x28] sm:$0xff]
      %v1208 = vld [vmem:[%s3 + $0x30] sm:$0xff]
      %v1209 = vld [vmem:[%s3 + $0x38] sm:$0xff]
      %v1210 = vld [vmem:[%s3 + $0x40] sm:$0xff]
      %v1211 = vld [vmem:[%s3 + $0x48] sm:$0xff]
      %v1212 = vld [vmem:[%s3 + $0x50] sm:$0xff]
      %v1213 = vld [vmem:[%s3 + $0x58] sm:$0xff]
      %v1214 = vld [vmem:[%s3 + $0x60] sm:$0xff]
      %v1215 = vld [vmem:[%s3 + $0x68] sm:$0xff]
      %v1216 = vld [vmem:[%s3 + $0x70] sm:$0xff]
      %v1217 = vld [vmem:[%s3 + $0x78] sm:$0xff]
      %v1218 = vld [vmem:[%s4] sm:$0x1]
      %v1220 = vlaneseq
      %v1221 = vshrl.u32 %v1220, 7
      %v1222 = vsub.s32 0, %v1221
      %v1223 = vrot.slane %v1218, %v1222
      %1225 = vmatprep.subr.mxu0 0.0
      %1226 = vmatpush1.msra.mxu0 %v1202
      %1227 = vmatprep.subr.mxu0 0.0
      %1228 = vmatpush1.msra.mxu0 %v1203
      %1229 = vmatprep.subr.mxu0 0.0
      %1230 = vmatpush1.msra.mxu0 %v1204
      %1231 = vmatprep.subr.mxu0 0.0
      %1232 = vmatpush1.msra.mxu0 %v1205
      %1233 = vmatprep.subr.mxu0 0.0
      %1234 = vmatpush1.msra.mxu0 %v1206
      %1235 = vmatprep.subr.mxu0 0.0
      %1236 = vmatpush1.msra.mxu0 %v1207
      %1237 = vmatprep.subr.mxu0 0.0
      %1238 = vmatpush1.msra.mxu0 %v1208
      %1239 = vmatprep.subr.mxu0 0.0
      %1240 = vmatpush1.msra.mxu0 %v1209
      %1241 = vmatprep.subr.mxu0 0.0
      %1242 = vmatpush1.msra.mxu0 %v1210
      %1243 = vmatprep.subr.mxu0 0.0
      %1244 = vmatpush1.msra.mxu0 %v1211
      %1245 = vmatprep.subr.mxu0 0.0
      %1246 = vmatpush1.msra.mxu0 %v1212
      %1247 = vmatprep.subr.mxu0 0.0
      %1248 = vmatpush1.msra.mxu0 %v1213
      %1249 = vmatprep.subr.mxu0 0.0
      %1250 = vmatpush1.msra.mxu0 %v1214
      %1251 = vmatprep.subr.mxu0 0.0
      %1252 = vmatpush1.msra.mxu0 %v1215
      %1253 = vmatprep.subr.mxu0 0.0
      %1254 = vmatpush1.msra.mxu0 %v1216
      %1255 = vmatprep.subr.mxu0 0.0
      %1256 = vmatpush1.msra.mxu0 %v1217
      %1257 = vmatprep.subr.mxu0 0.0
      %1258 = vmatpush1.msra.mxu0 0.0
      %1259 = vmatprep.subr.mxu0 0.0
      %1260 = vmatpush1.msra.mxu0 0.0
      %1261 = vmatprep.subr.mxu0 0.0
      %1262 = vmatpush1.msra.mxu0 0.0
      %1263 = vmatprep.subr.mxu0 0.0
      %1264 = vmatpush1.msra.mxu0 0.0
      %1265 = vmatprep.subr.mxu0 0.0
      %1266 = vmatpush1.msra.mxu0 0.0
      %1267 = vmatprep.subr.mxu0 0.0
      %1268 = vmatpush1.msra.mxu0 0.0
      %1269 = vmatprep.subr.mxu0 0.0
      %1270 = vmatpush1.msra.mxu0 0.0
      %1271 = vmatprep.subr.mxu0 0.0
      %1272 = vmatpush1.msra.mxu0 0.0
      %1273 = vmatprep.subr.mxu0 0.0
      %1274 = vmatpush1.msra.mxu0 0.0
      %1275 = vmatprep.subr.mxu0 0.0
      %1276 = vmatpush1.msra.mxu0 0.0
      %1277 = vmatprep.subr.mxu0 0.0
      %1278 = vmatpush1.msra.mxu0 0.0
      %1279 = vmatprep.subr.mxu0 0.0
      %1280 = vmatpush1.msra.mxu0 0.0
      %1281 = vmatprep.subr.mxu0 0.0
      %1282 = vmatpush1.msra.mxu0 0.0
      %1283 = vmatprep.subr.mxu0 0.0
      %1284 = vmatpush1.msra.mxu0 0.0
      %1285 = vmatprep.subr.mxu0 0.0
      %1286 = vmatpush1.msra.mxu0 0.0
      %1287 = vmatprep.subr.mxu0 0.0
      %1288 = vmatpush1.msra.mxu0 0.0
      %1289 = vmatprep.mubr.f32.mxu0 0.0
      %1290 = vmatmul.mubr.f32.gmra.mrb[0].mxu0 %v1186
      %v1291 = vpop.f32.mrb[0].mxu0
      %v1292 = vadd.f32 %v1223, %v1291
      %v1293 = vpop.f32.mrb[0].mxu0
      %1294 = vmatprep.mubr.f32.mxu0 0.0
      %1295 = vmatmul.mubr.f32.gmra.mrb[0].mxu0 %v1187
      %v1296 = vpop.f32.mrb[0].mxu0
      %v1297 = vadd.f32 %v1223, %v1296
      %v1298 = vpop.f32.mrb[0].mxu0
      %1299 = vmatprep.mubr.f32.mxu0 0.0
      %1300 = vmatmul.mubr.f32.gmra.mrb[0].mxu0 %v1188
      %v1301 = vpop.f32.mrb[0].mxu0
      %v1302 = vadd.f32 %v1223, %v1301
      %v1303 = vpop.f32.mrb[0].mxu0
      %1304 = vmatprep.mubr.f32.mxu0 0.0
      %1305 = vmatmul.mubr.f32.gmra.mrb[0].mxu0 %v1189
      %v1306 = vpop.f32.mrb[0].mxu0
      %v1307 = vadd.f32 %v1223, %v1306
      %v1308 = vpop.f32.mrb[0].mxu0
      %1309 = vmatprep.mubr.f32.mxu0 0.0
      %1310 = vmatmul.mubr.f32.gmra.mrb[0].mxu0 %v1190
      %v1311 = vpop.f32.mrb[0].mxu0
      %v1312 = vadd.f32 %v1223, %v1311
      %v1313 = vpop.f32.mrb[0].mxu0
      %1314 = vmatprep.mubr.f32.mxu0 0.0
      %1315 = vmatmul.mubr.f32.gmra.mrb[0].mxu0 %v1191
      %v1316 = vpop.f32.mrb[0].mxu0
      %v1317 = vadd.f32 %v1223, %v1316
      %v1318 = vpop.f32.mrb[0].mxu0
      %1319 = vmatprep.mubr.f32.mxu0 0.0
      %1320 = vmatmul.mubr.f32.gmra.mrb[0].mxu0 %v1192
      %v1321 = vpop.f32.mrb[0].mxu0
      %v1322 = vadd.f32 %v1223, %v1321
      %v1323 = vpop.f32.mrb[0].mxu0
      %1324 = vmatprep.mubr.f32.mxu0 0.0
      %1325 = vmatmul.mubr.f32.gmra.mrb[0].mxu0 %v1193
      %v1326 = vpop.f32.mrb[0].mxu0
      %v1327 = vadd.f32 %v1223, %v1326
      %v1328 = vpop.f32.mrb[0].mxu0
      %1329 = vmatprep.mubr.f32.mxu0 0.0
      %1330 = vmatmul.mubr.f32.gmra.mrb[0].mxu0 %v1194
      %v1331 = vpop.f32.mrb[0].mxu0
      %v1332 = vadd.f32 %v1223, %v1331
      %v1333 = vpop.f32.mrb[0].mxu0
      %1334 = vmatprep.mubr.f32.mxu0 0.0
      %1335 = vmatmul.mubr.f32.gmra.mrb[0].mxu0 %v1195
      %v1336 = vpop.f32.mrb[0].mxu0
      %v1337 = vadd.f32 %v1223, %v1336
      %v1338 = vpop.f32.mrb[0].mxu0
      %1339 = vmatprep.mubr.f32.mxu0 0.0
      %1340 = vmatmul.mubr.f32.gmra.mrb[0].mxu0 %v1196
      %v1341 = vpop.f32.mrb[0].mxu0
      %v1342 = vadd.f32 %v1223, %v1341
      %v1343 = vpop.f32.mrb[0].mxu0
      %1344 = vmatprep.mubr.f32.mxu0 0.0
      %1345 = vmatmul.mubr.f32.gmra.mrb[0].mxu0 %v1197
      %v1346 = vpop.f32.mrb[0].mxu0
      %v1347 = vadd.f32 %v1223, %v1346
      %v1348 = vpop.f32.mrb[0].mxu0
      %1349 = vmatprep.mubr.f32.mxu0 0.0
      %1350 = vmatmul.mubr.f32.gmra.mrb[0].mxu0 %v1198
      %v1351 = vpop.f32.mrb[0].mxu0
      %v1352 = vadd.f32 %v1223, %v1351
      %v1353 = vpop.f32.mrb[0].mxu0
      %1354 = vmatprep.mubr.f32.mxu0 0.0
      %1355 = vmatmul.mubr.f32.gmra.mrb[0].mxu0 %v1199
      %v1356 = vpop.f32.mrb[0].mxu0
      %v1357 = vadd.f32 %v1223, %v1356
      %v1358 = vpop.f32.mrb[0].mxu0
      %1359 = vmatprep.mubr.f32.mxu0 0.0
      %1360 = vmatmul.mubr.f32.gmra.mrb[0].mxu0 %v1200
      %v1361 = vpop.f32.mrb[0].mxu0
      %v1362 = vadd.f32 %v1223, %v1361
      %v1363 = vpop.f32.mrb[0].mxu0
      %1364 = vmatprep.mubr.f32.mxu0 0.0
      %1365 = vmatmul.mubr.f32.gmra.mrb[0].mxu0 %v1201
      %v1366 = vpop.f32.mrb[0].mxu0
      %v1367 = vadd.f32 %v1223, %v1366
      %v1368 = vpop.f32.mrb[0].mxu0
      %1369 = vdwg.mxu0
      %vm1370 = vcmask 23552
      %1371 = vst.msk [vmem:[%s226] sm:$0xff] %vm1370, %v1292
      %1372 = vst.msk [vmem:[%s226 + $0x8] sm:$0xff] %vm1370, %v1297
      %1373 = vst.msk [vmem:[%s226 + $0x10] sm:$0xff] %vm1370, %v1302
      %1374 = vst.msk [vmem:[%s226 + $0x18] sm:$0xff] %vm1370, %v1307
      %1375 = vst.msk [vmem:[%s226 + $0x20] sm:$0xff] %vm1370, %v1312
      %1376 = vst.msk [vmem:[%s226 + $0x28] sm:$0xff] %vm1370, %v1317
      %1377 = vst.msk [vmem:[%s226 + $0x30] sm:$0xff] %vm1370, %v1322
      %1378 = vst.msk [vmem:[%s226 + $0x38] sm:$0xff] %vm1370, %v1327
      %1379 = vst.msk [vmem:[%s226 + $0x40] sm:$0xff] %vm1370, %v1332
      %1380 = vst.msk [vmem:[%s226 + $0x48] sm:$0xff] %vm1370, %v1337
      %1381 = vst.msk [vmem:[%s226 + $0x50] sm:$0xff] %vm1370, %v1342
      %1382 = vst.msk [vmem:[%s226 + $0x58] sm:$0xff] %vm1370, %v1347
      %1383 = vst.msk [vmem:[%s226 + $0x60] sm:$0xff] %vm1370, %v1352
      %1384 = vst.msk [vmem:[%s226 + $0x68] sm:$0xff] %vm1370, %v1357
      %1385 = vst.msk [vmem:[%s226 + $0x70] sm:$0xff] %vm1370, %v1362
      %1386 = vst.msk [vmem:[%s226 + $0x78] sm:$0xff] %vm1370, %v1367
      %s1387 = smul.u32 16, %s16
      %p1388 = scmp.lt.s32.totalorder %s1387, 31
      %s1389 = scalar_select %p1388, %s1387, 31
      %s1390 = smul.addr %s1389, 8
      %s1391 = scalar_lea.vmem %s5, %s1390
      // Predicated region
      $region41: #{ghonn_forward.1} parent=39 // pred_check
        %p1392 = pneg %p144
      $region42: #{ghonn_forward.1} parent=39 // pred_check_branch
        %1394 = sbr.rel (%p1392) target = $region44
      $region43: #{ghonn_forward.1} parent=39 // pred_region
        %s1395 = smul.u32 16, %s16
      $region44: #{ghonn_forward.1} parent=39 // pred_fallthru
        _
    $region40: #{ghonn_forward.1} parent=5 // pred_fallthru
      _
    %p1396 = scmp.le.s32.totalorder 2, %s11
    // Predicated region
    $region45: #{ghonn_forward.1} parent=5 // pred_check
      %p1397 = pneg %p1396
    $region46: #{ghonn_forward.1} parent=5 // pred_check_branch
      %1399 = sbr.rel (%p1397) target = $region48
    $region47: #{ghonn_forward.1} parent=5 // pred_region
      %s1400 = ssub.s32 %s11, 2
      // Predicated region
      $region49: #{ghonn_forward.1} parent=47 // pred_check
        %p1401 = pneg %p150
      $region50: #{ghonn_forward.1} parent=47 // pred_check_branch
        %1403 = sbr.rel (%p1401) target = $region52
      $region51: #{ghonn_forward.1} parent=47 // pred_region
        %s1404 = smul.u32 16, %s17
        %p1405 = scmp.lt.s32.totalorder %s1404, 31
        %s1406 = scalar_select %p1405, %s1404, 31
        %s1407 = smul.addr %s1406, 8
        %s1408 = scalar_lea.vmem %s5, %s1407
      $region52: #{ghonn_forward.1} parent=47 // pred_fallthru
        _
    $region48: #{ghonn_forward.1} parent=5 // pred_fallthru
      _
  $region6: #{ghonn_forward.1} parent=0 // loop_footer
    %s15 = sadd.s32 1, %s11
  $region7: #{ghonn_forward.1} parent=0 // loop_footer_branch
    %10 = sbr.rel target = $region3
  $region8: #{ghonn_forward.1} parent=0 // loop_exit
    _

</llo_original>
